<compile_context>
chip_gen: v6e
topology: v6e:2x2x1
jax: 0.10.0
libtpu: 0.0.40
codegen_flags: <defaults>
</compile_context>

<pallas_src>
import numpy as np
import jax
import jax.numpy as jnp
from jax.experimental import pallas as pl
from jax.experimental.pallas import tpu as pltpu


def _round_up(x, m):
    return (x + m - 1) // m * m


def _make_sfm_kernel(H, F, W, OUTW):
    """W  = 128-aligned width of each gate group; OUTW = width of fused [p|h|pad] slab."""

    def kernel(x_ref, h_ref, sre_ref, sim_ref, t_ref,
               wx_ref, wu_ref, bg_ref,
               eh0_ref, eh1_ref, ef_ref,
               uab_ref, ba_ref, tpf_ref,
               wf_ref, bf_ref,
               out_ref, sre_out, sim_out):
        x = x_ref[...]
        h_tm1 = h_ref[...]
        sre_prev = sre_ref[...]          # (bb, H*F) lane-dense
        sim_prev = sim_ref[...]          # (bb, H*F)
        t = t_ref[...]                   # (bb, 1), already incremented in wrapper

        # Fused gate projection: (bb, 2W) lane-dense output.
        g = (jnp.dot(x, wx_ref[...], preferred_element_type=jnp.float32)
             + jnp.dot(h_tm1, wu_ref[...], preferred_element_type=jnp.float32)
             + bg_ref[...])

        sig = jax.nn.sigmoid(g[:, :W])   # [ i | ste | o | fre | pad ]  (vreg-aligned slice)
        tnh = jnp.tanh(g[:, W:])         # [ c_pre | pad ]

        # Frequency response placed in the same lane range as `fre` ([3H, 3H+F)) so the
        # re/im expansion reuses ef.  Pad lanes give cos(0)/sin(0); ef zeroes them out.
        omega = t * tpf_ref[...]         # (bb, W)
        re_s = jnp.cos(omega)
        im_s = jnp.sin(omega)

        bb = sig.shape[0]

        # Exact 0/1 expansion matmuls over full 128-lane slabs (K = W, no narrow slices).
        # repeat-over-F from lanes [0, H): i (sigmoid slab) and c_pre (tanh slab).
        icp = jnp.dot(jnp.concatenate([sig, tnh], axis=0), eh0_ref[...],
                      preferred_element_type=jnp.float32)            # (2bb, HF)
        i_f = icp[:bb]
        cpre_f = icp[bb:]
        # repeat-over-F from lanes [H, 2H): ste.
        ste_f = jnp.dot(sig, eh1_ref[...], preferred_element_type=jnp.float32)
        # tile-over-H from lanes [3H, 3H+F): fre, re, im.
        frei = jnp.dot(jnp.concatenate([sig, re_s, im_s], axis=0), ef_ref[...],
                       preferred_element_type=jnp.float32)           # (3bb, HF)
        fre_f = frei[:bb]
        re_f = frei[bb:2 * bb]
        im_f = frei[2 * bb:]

        # Spectral state update, full-width VPU work on (bb, H*F).
        f_f = ste_f * fre_f
        c_f = i_f * cpre_f
        S_re = f_f * sre_prev + c_f * re_f
        S_im = f_f * sim_prev + c_f * im_f
        A = jnp.sqrt(S_re * S_re + S_im * S_im)

        # Amplitude aggregation; output columns land in the `o` lane range [2H, 3H),
        # zero elsewhere, so h = o * A_a needs no gate extraction.
        A_a = jnp.tanh(jnp.dot(A, uab_ref[...], preferred_element_type=jnp.float32)
                       + ba_ref[...])     # (bb, W)
        h_slab = sig * A_a                # h at lanes [2H, 3H), exactly zero elsewhere

        # Fused output slab [ p | h | pad ]: W_p columns + identity columns.
        out = (jnp.dot(h_slab, wf_ref[...], preferred_element_type=jnp.float32)
               + bf_ref[...])
        out_ref[...] = out                # full-width, unmasked store
        sre_out[...] = S_re
        sim_out[...] = S_im

    return kernel


def pack_sfm_params(params, input_dim, hidden_dim, freq_dim, output_dim):
    """One-time packing of parameters (hoist out of any per-step loop)."""
    I, H, F, O = input_dim, hidden_dim, freq_dim, output_dim
    HF = H * F
    f32 = jnp.float32
    W = _round_up(3 * H + F, 128)     # 128-aligned width of each gate group
    OUTW = _round_up(O + H, 128)      # fused [p | h | pad] output width

    def sig_group(wi, wste, wo, wfre, n_rows):
        pad = jnp.zeros((n_rows, W - (3 * H + F)), f32)
        return jnp.concatenate([wi, wste, wo, wfre, pad], axis=1)

    def tanh_group(wc, n_rows):
        pad = jnp.zeros((n_rows, W - H), f32)
        return jnp.concatenate([wc, pad], axis=1)

    Wx = jnp.concatenate([
        sig_group(params["W_i"].T, params["W_ste"].T, params["W_o"].T,
                  params["W_fre"].T, I),
        tanh_group(params["W_c"].T, I)], axis=1).astype(f32)              # (I, 2W)
    Wu = jnp.concatenate([
        sig_group(params["U_i"].T, params["U_ste"].T, params["U_o"].T,
                  params["U_fre"].T, H),
        tanh_group(params["U_c"].T, H)], axis=1).astype(f32)              # (H, 2W)
    bg = jnp.concatenate([
        sig_group(params["b_i"][None, :], params["b_ste"][None, :],
                  params["b_o"][None, :], params["b_fre"][None, :], 1),
        tanh_group(params["b_c"][None, :], 1)], axis=1).astype(f32)       # (1, 2W)

    # Exact 0/1 expansion matrices, 128-row (gate selection folded in).
    eh_core = np.kron(np.eye(H, dtype=np.float32), np.ones((1, F), np.float32))  # (H, HF)
    ef_core = np.kron(np.ones((1, H), np.float32), np.eye(F, dtype=np.float32))  # (F, HF)
    eh0 = np.zeros((W, HF), np.float32); eh0[0:H] = eh_core               # i / c_pre
    eh1 = np.zeros((W, HF), np.float32); eh1[H:2 * H] = eh_core           # ste
    ef = np.zeros((W, HF), np.float32); ef[3 * H:3 * H + F] = ef_core     # fre / re / im
    tpf = np.zeros((1, W), np.float32)
    tpf[0, 3 * H:3 * H + F] = 2.0 * np.pi * np.arange(F, dtype=np.float32)

    # Block-diagonal U_a, output columns aligned with the `o` lane range [2H, 3H).
    ua = params["U_a"].reshape(F, 1).astype(f32)
    uab_core = jnp.kron(jnp.eye(H, dtype=f32), ua)                        # (HF, H)
    uab = jnp.concatenate([jnp.zeros((HF, 2 * H), f32), uab_core,
                           jnp.zeros((HF, W - 3 * H), f32)], axis=1)      # (HF, W)
    ba = jnp.concatenate([jnp.zeros((2 * H,), f32), params["b_a"].astype(f32),
                          jnp.zeros((W - 3 * H,), f32)]).reshape(1, W)

    # Fused output projection: rows [2H, 3H) carry [W_p | I_H | 0]; other rows zero.
    blk = jnp.concatenate([params["W_p"].T.astype(f32),
                           jnp.eye(H, dtype=f32),
                           jnp.zeros((H, OUTW - O - H), f32)], axis=1)    # (H, OUTW)
    wfuse = jnp.concatenate([jnp.zeros((2 * H, OUTW), f32), blk,
                             jnp.zeros((W - 3 * H, OUTW), f32)], axis=0)  # (W, OUTW)
    bfuse = jnp.concatenate([(params["b_Wp"] + params["b_p"]).astype(f32),
                             jnp.zeros((OUTW - O,), f32)]).reshape(1, OUTW)

    return dict(Wx=Wx, Wu=Wu, bg=bg,
                eh0=jnp.asarray(eh0), eh1=jnp.asarray(eh1), ef=jnp.asarray(ef),
                tpf=jnp.asarray(tpf), uab=uab, ba=ba, wfuse=wfuse, bfuse=bfuse,
                W_slab=W, OUTW=OUTW, dims=(I, H, F, O))


def _choose_batch_tile(B, I, H, F, W, OUTW, max_bb=512,
                       vmem_budget_bytes=16 * 1024 * 1024):
    """VMEM-budgeted, megacore-aware batch tile; batch padded to a multiple of 8."""
    HF = H * F
    Bp = _round_up(max(B, 1), 8)
    # Bytes per batch row: double-buffered in/out streams + live f32 temporaries.
    stream = 2 * (I + H + 1 + 2 * HF) + 2 * (OUTW + 2 * HF)
    temps = 16 * HF + 6 * W + 2 * OUTW
    per_row = 4 * (stream + temps)
    bb = max(8, min(max_bb, (vmem_budget_bytes // per_row) // 8 * 8))
    bb = min(bb, Bp)
    if Bp >= 16:                       # ensure >=2 grid steps so v7x megacore can shard
        bb = min(bb, _round_up((Bp + 1) // 2, 8))
    Bpad = _round_up(Bp, bb)           # no ragged last tile
    return bb, Bpad


def sfm_cell(x, states, packed, *, max_bb=512):
    """Pallas-backed SFMCell forward. Returns (p, (p, h, S_re, S_im, time_t))."""
    p_tm1, h_tm1, S_re_tm1, S_im_tm1, time_tm1 = states
    I, H, F, O = packed["dims"]
    HF = H * F
    W = packed["W_slab"]
    OUTW = packed["OUTW"]
    G = 2 * W
    B = x.shape[0]

    time_t = (time_tm1 + 1.0).astype(jnp.float32)            # state update in wrapper
    bb, Bpad = _choose_batch_tile(B, I, H, F, W, OUTW, max_bb=max_bb)

    def pad_rows(a):
        if a.shape[0] == Bpad:
            return a
        return jnp.concatenate(
            [a, jnp.zeros((Bpad - a.shape[0],) + a.shape[1:], a.dtype)], axis=0)

    x_p = pad_rows(x.astype(jnp.float32))
    h_p = pad_rows(h_tm1.astype(jnp.float32))
    sre_p = pad_rows(S_re_tm1.reshape(B, HF).astype(jnp.float32))
    sim_p = pad_rows(S_im_tm1.reshape(B, HF).astype(jnp.float32))
    t_p = pad_rows(time_t.reshape(B, 1))

    grid = (Bpad // bb,)

    def row(n):        # per-batch-tile streamed operand
        return pl.BlockSpec((bb, n), lambda b: (b, 0))

    def const(shape):  # weights/constants: same block every step -> VMEM-resident
        return pl.BlockSpec(shape, lambda b: (0, 0))

    in_specs = [
        row(I), row(H), row(HF), row(HF), row(1),
        const((I, G)), const((H, G)), const((1, G)),
        const((W, HF)), const((W, HF)), const((W, HF)),
        const((HF, W)), const((1, W)), const((1, W)),
        const((W, OUTW)), const((1, OUTW)),
    ]
    out_specs = (row(OUTW), row(HF), row(HF))
    out_shapes = (
        jax.ShapeDtypeStruct((Bpad, OUTW), jnp.float32),
        jax.ShapeDtypeStruct((Bpad, HF), jnp.float32),
        jax.ShapeDtypeStruct((Bpad, HF), jnp.float32),
    )

    fn = pl.pallas_call(
        _make_sfm_kernel(H, F, W, OUTW),
        out_shape=out_shapes,
        grid=grid,
        in_specs=in_specs,
        out_specs=out_specs,
        compiler_params=pltpu.CompilerParams(
            dimension_semantics=("parallel",),
            vmem_limit_bytes=32 * 1024 * 1024),
    )
    slab, sre_f, sim_f = fn(
        x_p, h_p, sre_p, sim_p, t_p,
        packed["Wx"], packed["Wu"], packed["bg"],
        packed["eh0"], packed["eh1"], packed["ef"],
        packed["uab"], packed["ba"], packed["tpf"],
        packed["wfuse"], packed["bfuse"],
    )
    p = slab[:B, :O]
    h = slab[:B, O:O + H]
    S_re = sre_f[:B].reshape(B, H, F)
    S_im = sim_f[:B].reshape(B, H, F)
    return p, (p, h, S_re, S_im, time_t)


def sfm_cell_ref(x, states, params):
    """Pure-JAX reference (mirrors the PyTorch forward exactly)."""
    p_tm1, h_tm1, S_re_tm1, S_im_tm1, time_tm1 = states
    F = S_re_tm1.shape[2]
    time_t = time_tm1 + 1.0

    def lin(a, w, b=None):
        y = a @ w.T
        return y if b is None else y + b

    i = jax.nn.sigmoid(lin(x, params["W_i"], params["b_i"]) + lin(h_tm1, params["U_i"]))
    ste = jax.nn.sigmoid(lin(x, params["W_ste"], params["b_ste"]) + lin(h_tm1, params["U_ste"]))
    fre = jax.nn.sigmoid(lin(x, params["W_fre"], params["b_fre"]) + lin(h_tm1, params["U_fre"]))
    f = ste[:, :, None] * fre[:, None, :]
    c = i * jnp.tanh(lin(x, params["W_c"], params["b_c"]) + lin(h_tm1, params["U_c"]))
    omega = 2 * np.pi * time_t[:, None, None]
    omega = omega * jnp.arange(F, dtype=jnp.float32)[None, :]
    re = jnp.cos(omega)
    im = jnp.sin(omega)
    S_re = f * S_re_tm1 + c[:, :, None] * re
    S_im = f * S_im_tm1 + c[:, :, None] * im
    A = jnp.sqrt(S_re ** 2 + S_im ** 2)
    A_a = jnp.tanh((A @ params["U_a"].T).squeeze(-1) + params["b_a"])
    o = jax.nn.sigmoid(lin(x, params["W_o"], params["b_o"]) + lin(h_tm1, params["U_o"]))
    h = o * A_a
    p = lin(h, params["W_p"], params["b_Wp"]) + params["b_p"]
    return p, (p, h, S_re, S_im, time_t)


def init_params(key, input_dim, hidden_dim, freq_dim, output_dim):
    ks = jax.random.split(key, 16)
    s = 0.1

    def w(k, shape):
        return (s * jax.random.normal(k, shape)).astype(jnp.float32)

    return {
        "W_i": w(ks[0], (hidden_dim, input_dim)), "b_i": w(ks[1], (hidden_dim,)),
        "U_i": w(ks[2], (hidden_dim, hidden_dim)),
        "W_ste": w(ks[3], (hidden_dim, input_dim)), "b_ste": w(ks[4], (hidden_dim,)),
        "U_ste": w(ks[5], (hidden_dim, hidden_dim)),
        "W_fre": w(ks[6], (freq_dim, input_dim)), "b_fre": w(ks[7], (freq_dim,)),
        "U_fre": w(ks[8], (freq_dim, hidden_dim)),
        "W_c": w(ks[9], (hidden_dim, input_dim)), "b_c": w(ks[10], (hidden_dim,)),
        "U_c": w(ks[11], (hidden_dim, hidden_dim)),
        "W_o": w(ks[12], (hidden_dim, input_dim)), "b_o": w(ks[13], (hidden_dim,)),
        "U_o": w(ks[14], (hidden_dim, hidden_dim)),
        "U_a": w(ks[15], (1, freq_dim)),
        "b_a": jnp.zeros((hidden_dim,), jnp.float32),
        "W_p": w(jax.random.fold_in(key, 100), (output_dim, hidden_dim)),
        "b_Wp": w(jax.random.fold_in(key, 101), (output_dim,)),
        "b_p": jnp.zeros((output_dim,), jnp.float32),
    }


if __name__ == "__main__":
    B, I, H, F, O = 2, 8, 32, 16, 4
    key = jax.random.PRNGKey(0)
    k_x, k_h, k_sre, k_sim, k_p, k_param = jax.random.split(key, 6)

    x = jax.random.normal(k_x, (B, I), jnp.float32)
    p_tm1 = jax.random.normal(k_p, (B, O), jnp.float32)
    h_tm1 = 0.1 * jax.random.normal(k_h, (B, H), jnp.float32)
    S_re_tm1 = 0.1 * jax.random.normal(k_sre, (B, H, F), jnp.float32)
    S_im_tm1 = 0.1 * jax.random.normal(k_sim, (B, H, F), jnp.float32)
    time_tm1 = jnp.zeros((B,), jnp.float32)
    states = (p_tm1, h_tm1, S_re_tm1, S_im_tm1, time_tm1)

    params = init_params(k_param, I, H, F, O)
    packed = pack_sfm_params(params, I, H, F, O)   # hoisted: pack once, reuse every step

    p, new_states = sfm_cell(x, states, packed)
    jax.block_until_ready((p, new_states))

    # Verify against pure-JAX reference.
    p_ref, ref_states = sfm_cell_ref(x, states, params)
    for a, b in zip((p,) + new_states, (p_ref,) + ref_states):
        np.testing.assert_allclose(np.asarray(a), np.asarray(b), rtol=1e-5, atol=1e-5)

    print("KERNEL_OK")
</pallas_src>

<mosaic_0001>
module attributes {stable_mosaic.version = 11 : i64} {
  func.func @kernel(%arg0: i32, %arg1: memref<8x8xf32, #tpu.memory_space<vmem>>, %arg2: memref<8x32xf32, #tpu.memory_space<vmem>>, %arg3: memref<8x512xf32, #tpu.memory_space<vmem>>, %arg4: memref<8x512xf32, #tpu.memory_space<vmem>>, %arg5: memref<8x1xf32, #tpu.memory_space<vmem>>, %arg6: memref<8x256xf32, #tpu.memory_space<vmem>>, %arg7: memref<32x256xf32, #tpu.memory_space<vmem>>, %arg8: memref<1x256xf32, #tpu.memory_space<vmem>>, %arg9: memref<128x512xf32, #tpu.memory_space<vmem>>, %arg10: memref<128x512xf32, #tpu.memory_space<vmem>>, %arg11: memref<128x512xf32, #tpu.memory_space<vmem>>, %arg12: memref<512x128xf32, #tpu.memory_space<vmem>>, %arg13: memref<1x128xf32, #tpu.memory_space<vmem>>, %arg14: memref<1x128xf32, #tpu.memory_space<vmem>>, %arg15: memref<128x128xf32, #tpu.memory_space<vmem>>, %arg16: memref<1x128xf32, #tpu.memory_space<vmem>>, %arg17: memref<8x128xf32, #tpu.memory_space<vmem>>, %arg18: memref<8x512xf32, #tpu.memory_space<vmem>>, %arg19: memref<8x512xf32, #tpu.memory_space<vmem>>) attributes {dimension_semantics = [#tpu.dimension_semantics<parallel>], iteration_bounds = array<i64: 1>, scalar_prefetch = 0 : i64, scratch_operands = 0 : i64, tpu.core_type = #tpu.core_type<tc>, window_params = [{transform_indices = @transform_0, window_bounds = array<i64: 8, 8>}, {transform_indices = @transform_1, window_bounds = array<i64: 8, 32>}, {transform_indices = @transform_2, window_bounds = array<i64: 8, 512>}, {transform_indices = @transform_3, window_bounds = array<i64: 8, 512>}, {transform_indices = @transform_4, window_bounds = array<i64: 8, 1>}, {pipeline_mode = #tpu.pipeline_mode<synchronous>, transform_indices = @transform_5, window_bounds = array<i64: 8, 256>}, {pipeline_mode = #tpu.pipeline_mode<synchronous>, transform_indices = @transform_6, window_bounds = array<i64: 32, 256>}, {pipeline_mode = #tpu.pipeline_mode<synchronous>, transform_indices = @transform_7, window_bounds = array<i64: 1, 256>}, {pipeline_mode = #tpu.pipeline_mode<synchronous>, transform_indices = @transform_8, window_bounds = array<i64: 128, 512>}, {pipeline_mode = #tpu.pipeline_mode<synchronous>, transform_indices = @transform_9, window_bounds = array<i64: 128, 512>}, {pipeline_mode = #tpu.pipeline_mode<synchronous>, transform_indices = @transform_10, window_bounds = array<i64: 128, 512>}, {pipeline_mode = #tpu.pipeline_mode<synchronous>, transform_indices = @transform_11, window_bounds = array<i64: 512, 128>}, {pipeline_mode = #tpu.pipeline_mode<synchronous>, transform_indices = @transform_12, window_bounds = array<i64: 1, 128>}, {pipeline_mode = #tpu.pipeline_mode<synchronous>, transform_indices = @transform_13, window_bounds = array<i64: 1, 128>}, {pipeline_mode = #tpu.pipeline_mode<synchronous>, transform_indices = @transform_14, window_bounds = array<i64: 128, 128>}, {pipeline_mode = #tpu.pipeline_mode<synchronous>, transform_indices = @transform_15, window_bounds = array<i64: 1, 128>}, {transform_indices = @transform_16, window_bounds = array<i64: 8, 128>}, {transform_indices = @transform_17, window_bounds = array<i64: 8, 512>}, {transform_indices = @transform_18, window_bounds = array<i64: 8, 512>}]} {
    %c0 = arith.constant 0 : index
    %c0_0 = arith.constant 0 : index
    %0 = vector.load %arg1[%c0, %c0_0] : memref<8x8xf32, #tpu.memory_space<vmem>>, vector<8x8xf32>
    %c0_1 = arith.constant 0 : index
    %c0_2 = arith.constant 0 : index
    %1 = vector.load %arg2[%c0_1, %c0_2] : memref<8x32xf32, #tpu.memory_space<vmem>>, vector<8x32xf32>
    %c0_3 = arith.constant 0 : index
    %c0_4 = arith.constant 0 : index
    %2 = vector.load %arg3[%c0_3, %c0_4] : memref<8x512xf32, #tpu.memory_space<vmem>>, vector<8x512xf32>
    %c0_5 = arith.constant 0 : index
    %c0_6 = arith.constant 0 : index
    %3 = vector.load %arg4[%c0_5, %c0_6] : memref<8x512xf32, #tpu.memory_space<vmem>>, vector<8x512xf32>
    %c0_7 = arith.constant 0 : index
    %c0_8 = arith.constant 0 : index
    %4 = vector.load %arg5[%c0_7, %c0_8] : memref<8x1xf32, #tpu.memory_space<vmem>>, vector<8x1xf32>
    %c0_9 = arith.constant 0 : index
    %c0_10 = arith.constant 0 : index
    %5 = vector.load %arg6[%c0_9, %c0_10] : memref<8x256xf32, #tpu.memory_space<vmem>>, vector<8x256xf32>
    %cst = arith.constant dense<0.000000e+00> : vector<8x256xf32>
    %6 = tpu.matmul %0, %5, %cst {dimension_numbers = #tpu.dot_dimension_numbers<[1], [0], [0], [1], [0, 0, 1, 1], [], []>} : vector<8x8xf32>, vector<8x256xf32>, vector<8x256xf32> -> vector<8x256xf32>
    %c0_11 = arith.constant 0 : index
    %c0_12 = arith.constant 0 : index
    %7 = vector.load %arg7[%c0_11, %c0_12] : memref<32x256xf32, #tpu.memory_space<vmem>>, vector<32x256xf32>
    %cst_13 = arith.constant dense<0.000000e+00> : vector<8x256xf32>
    %8 = tpu.matmul %1, %7, %cst_13 {dimension_numbers = #tpu.dot_dimension_numbers<[1], [0], [0], [1], [0, 0, 1, 1], [], []>} : vector<8x32xf32>, vector<32x256xf32>, vector<8x256xf32> -> vector<8x256xf32>
    %9 = arith.addf %6, %8 : vector<8x256xf32>
    %c0_14 = arith.constant 0 : index
    %c0_15 = arith.constant 0 : index
    %10 = vector.load %arg8[%c0_14, %c0_15] : memref<1x256xf32, #tpu.memory_space<vmem>>, vector<1x256xf32>
    %11 = vector.broadcast %10 : vector<1x256xf32> to vector<8x256xf32>
    %12 = arith.addf %9, %11 : vector<8x256xf32>
    %13 = vector.extract_strided_slice %12 {offsets = [0, 0], sizes = [8, 128], strides = [1, 1]} : vector<8x256xf32> to vector<8x128xf32>
    %14 = arith.negf %13 : vector<8x128xf32>
    %15 = math.exp %14 : vector<8x128xf32>
    %cst_16 = arith.constant 1.000000e+00 : f32
    %16 = vector.broadcast %cst_16 : f32 to vector<8x128xf32>
    %17 = arith.addf %16, %15 : vector<8x128xf32>
    %18 = arith.divf %16, %17 : vector<8x128xf32>
    %19 = vector.extract_strided_slice %12 {offsets = [0, 128], sizes = [8, 128], strides = [1, 1]} : vector<8x256xf32> to vector<8x128xf32>
    %20 = math.tanh %19 : vector<8x128xf32>
    %c0_17 = arith.constant 0 : index
    %c0_18 = arith.constant 0 : index
    %21 = vector.load %arg14[%c0_17, %c0_18] : memref<1x128xf32, #tpu.memory_space<vmem>>, vector<1x128xf32>
    %22 = vector.broadcast %4 : vector<8x1xf32> to vector<8x128xf32>
    %23 = vector.broadcast %21 : vector<1x128xf32> to vector<8x128xf32>
    %24 = arith.mulf %22, %23 : vector<8x128xf32>
    %25 = math.cos %24 : vector<8x128xf32>
    %26 = math.sin %24 : vector<8x128xf32>
    %27 = tpu.concatenate %18, %20 in 0 : vector<8x128xf32>, vector<8x128xf32> -> vector<16x128xf32>
    %c0_19 = arith.constant 0 : index
    %c0_20 = arith.constant 0 : index
    %28 = vector.load %arg9[%c0_19, %c0_20] : memref<128x512xf32, #tpu.memory_space<vmem>>, vector<128x512xf32>
    %cst_21 = arith.constant dense<0.000000e+00> : vector<16x512xf32>
    %29 = tpu.matmul %27, %28, %cst_21 {dimension_numbers = #tpu.dot_dimension_numbers<[1], [0], [0], [1], [0, 0, 1, 1], [], []>} : vector<16x128xf32>, vector<128x512xf32>, vector<16x512xf32> -> vector<16x512xf32>
    %30 = vector.extract_strided_slice %29 {offsets = [0, 0], sizes = [8, 512], strides = [1, 1]} : vector<16x512xf32> to vector<8x512xf32>
    %31 = vector.extract_strided_slice %29 {offsets = [8, 0], sizes = [8, 512], strides = [1, 1]} : vector<16x512xf32> to vector<8x512xf32>
    %c0_22 = arith.constant 0 : index
    %c0_23 = arith.constant 0 : index
    %32 = vector.load %arg10[%c0_22, %c0_23] : memref<128x512xf32, #tpu.memory_space<vmem>>, vector<128x512xf32>
    %cst_24 = arith.constant dense<0.000000e+00> : vector<8x512xf32>
    %33 = tpu.matmul %18, %32, %cst_24 {dimension_numbers = #tpu.dot_dimension_numbers<[1], [0], [0], [1], [0, 0, 1, 1], [], []>} : vector<8x128xf32>, vector<128x512xf32>, vector<8x512xf32> -> vector<8x512xf32>
    %34 = tpu.concatenate %18, %25, %26 in 0 : vector<8x128xf32>, vector<8x128xf32>, vector<8x128xf32> -> vector<24x128xf32>
    %c0_25 = arith.constant 0 : index
    %c0_26 = arith.constant 0 : index
    %35 = vector.load %arg11[%c0_25, %c0_26] : memref<128x512xf32, #tpu.memory_space<vmem>>, vector<128x512xf32>
    %cst_27 = arith.constant dense<0.000000e+00> : vector<24x512xf32>
    %36 = tpu.matmul %34, %35, %cst_27 {dimension_numbers = #tpu.dot_dimension_numbers<[1], [0], [0], [1], [0, 0, 1, 1], [], []>} : vector<24x128xf32>, vector<128x512xf32>, vector<24x512xf32> -> vector<24x512xf32>
    %37 = vector.extract_strided_slice %36 {offsets = [0, 0], sizes = [8, 512], strides = [1, 1]} : vector<24x512xf32> to vector<8x512xf32>
    %38 = vector.extract_strided_slice %36 {offsets = [8, 0], sizes = [8, 512], strides = [1, 1]} : vector<24x512xf32> to vector<8x512xf32>
    %39 = vector.extract_strided_slice %36 {offsets = [16, 0], sizes = [8, 512], strides = [1, 1]} : vector<24x512xf32> to vector<8x512xf32>
    %40 = arith.mulf %33, %37 : vector<8x512xf32>
    %41 = arith.mulf %30, %31 : vector<8x512xf32>
    %42 = arith.mulf %40, %2 : vector<8x512xf32>
    %43 = arith.mulf %41, %38 : vector<8x512xf32>
    %44 = arith.addf %42, %43 : vector<8x512xf32>
    %45 = arith.mulf %40, %3 : vector<8x512xf32>
    %46 = arith.mulf %41, %39 : vector<8x512xf32>
    %47 = arith.addf %45, %46 : vector<8x512xf32>
    %48 = arith.mulf %44, %44 : vector<8x512xf32>
    %49 = arith.mulf %47, %47 : vector<8x512xf32>
    %50 = arith.addf %48, %49 : vector<8x512xf32>
    %51 = math.sqrt %50 : vector<8x512xf32>
    %c0_28 = arith.constant 0 : index
    %c0_29 = arith.constant 0 : index
    %52 = vector.load %arg12[%c0_28, %c0_29] : memref<512x128xf32, #tpu.memory_space<vmem>>, vector<512x128xf32>
    %cst_30 = arith.constant dense<0.000000e+00> : vector<8x128xf32>
    %53 = tpu.matmul %51, %52, %cst_30 {dimension_numbers = #tpu.dot_dimension_numbers<[1], [0], [0], [1], [0, 0, 1, 1], [], []>} : vector<8x512xf32>, vector<512x128xf32>, vector<8x128xf32> -> vector<8x128xf32>
    %c0_31 = arith.constant 0 : index
    %c0_32 = arith.constant 0 : index
    %54 = vector.load %arg13[%c0_31, %c0_32] : memref<1x128xf32, #tpu.memory_space<vmem>>, vector<1x128xf32>
    %55 = vector.broadcast %54 : vector<1x128xf32> to vector<8x128xf32>
    %56 = arith.addf %53, %55 : vector<8x128xf32>
    %57 = math.tanh %56 : vector<8x128xf32>
    %58 = arith.mulf %18, %57 : vector<8x128xf32>
    %c0_33 = arith.constant 0 : index
    %c0_34 = arith.constant 0 : index
    %59 = vector.load %arg15[%c0_33, %c0_34] : memref<128x128xf32, #tpu.memory_space<vmem>>, vector<128x128xf32>
    %cst_35 = arith.constant dense<0.000000e+00> : vector<8x128xf32>
    %60 = tpu.matmul %58, %59, %cst_35 {dimension_numbers = #tpu.dot_dimension_numbers<[1], [0], [0], [1], [0, 0, 1, 1], [], []>} : vector<8x128xf32>, vector<128x128xf32>, vector<8x128xf32> -> vector<8x128xf32>
    %c0_36 = arith.constant 0 : index
    %c0_37 = arith.constant 0 : index
    %61 = vector.load %arg16[%c0_36, %c0_37] : memref<1x128xf32, #tpu.memory_space<vmem>>, vector<1x128xf32>
    %62 = vector.broadcast %61 : vector<1x128xf32> to vector<8x128xf32>
    %63 = arith.addf %60, %62 : vector<8x128xf32>
    %c0_38 = arith.constant 0 : index
    %c0_39 = arith.constant 0 : index
    %64 = vector.load %arg17[%c0_38, %c0_39] : memref<8x128xf32, #tpu.memory_space<vmem>>, vector<8x128xf32>
    tpu.vector_store %arg17[%c0_38, %c0_39], %63 {strides = array<i32>} : memref<8x128xf32, #tpu.memory_space<vmem>>, vector<8x128xf32>,
    %c0_40 = arith.constant 0 : index
    %c0_41 = arith.constant 0 : index
    %65 = vector.load %arg18[%c0_40, %c0_41] : memref<8x512xf32, #tpu.memory_space<vmem>>, vector<8x512xf32>
    tpu.vector_store %arg18[%c0_40, %c0_41], %44 {strides = array<i32>} : memref<8x512xf32, #tpu.memory_space<vmem>>, vector<8x512xf32>,
    %c0_42 = arith.constant 0 : index
    %c0_43 = arith.constant 0 : index
    %66 = vector.load %arg19[%c0_42, %c0_43] : memref<8x512xf32, #tpu.memory_space<vmem>>, vector<8x512xf32>
    tpu.vector_store %arg19[%c0_42, %c0_43], %47 {strides = array<i32>} : memref<8x512xf32, #tpu.memory_space<vmem>>, vector<8x512xf32>,
    return
  }
  func.func @transform_0(%arg0: i32) -> (i32, i32) {
    %c0_i32 = arith.constant 0 : i32
    %c0_i32_0 = arith.constant 0 : i32
    return %arg0, %c0_i32 : i32, i32
  }
  func.func @transform_1(%arg0: i32) -> (i32, i32) {
    %c0_i32 = arith.constant 0 : i32
    %c0_i32_0 = arith.constant 0 : i32
    return %arg0, %c0_i32 : i32, i32
  }
  func.func @transform_2(%arg0: i32) -> (i32, i32) {
    %c0_i32 = arith.constant 0 : i32
    %c0_i32_0 = arith.constant 0 : i32
    return %arg0, %c0_i32 : i32, i32
  }
  func.func @transform_3(%arg0: i32) -> (i32, i32) {
    %c0_i32 = arith.constant 0 : i32
    %c0_i32_0 = arith.constant 0 : i32
    return %arg0, %c0_i32 : i32, i32
  }
  func.func @transform_4(%arg0: i32) -> (i32, i32) {
    %c0_i32 = arith.constant 0 : i32
    %c0_i32_0 = arith.constant 0 : i32
    return %arg0, %c0_i32 : i32, i32
  }
  func.func @transform_5(%arg0: i32) -> (i32, i32) {
    %c0_i32 = arith.constant 0 : i32
    %c0_i32_0 = arith.constant 0 : i32
    %c0_i32_1 = arith.constant 0 : i32
    return %c0_i32, %c0_i32_0 : i32, i32
  }
  func.func @transform_6(%arg0: i32) -> (i32, i32) {
    %c0_i32 = arith.constant 0 : i32
    %c0_i32_0 = arith.constant 0 : i32
    %c0_i32_1 = arith.constant 0 : i32
    return %c0_i32, %c0_i32_0 : i32, i32
  }
  func.func @transform_7(%arg0: i32) -> (i32, i32) {
    %c0_i32 = arith.constant 0 : i32
    %c0_i32_0 = arith.constant 0 : i32
    %c0_i32_1 = arith.constant 0 : i32
    return %c0_i32, %c0_i32_0 : i32, i32
  }
  func.func @transform_8(%arg0: i32) -> (i32, i32) {
    %c0_i32 = arith.constant 0 : i32
    %c0_i32_0 = arith.constant 0 : i32
    %c0_i32_1 = arith.constant 0 : i32
    return %c0_i32, %c0_i32_0 : i32, i32
  }
  func.func @transform_9(%arg0: i32) -> (i32, i32) {
    %c0_i32 = arith.constant 0 : i32
    %c0_i32_0 = arith.constant 0 : i32
    %c0_i32_1 = arith.constant 0 : i32
    return %c0_i32, %c0_i32_0 : i32, i32
  }
  func.func @transform_10(%arg0: i32) -> (i32, i32) {
    %c0_i32 = arith.constant 0 : i32
    %c0_i32_0 = arith.constant 0 : i32
    %c0_i32_1 = arith.constant 0 : i32
    return %c0_i32, %c0_i32_0 : i32, i32
  }
  func.func @transform_11(%arg0: i32) -> (i32, i32) {
    %c0_i32 = arith.constant 0 : i32
    %c0_i32_0 = arith.constant 0 : i32
    %c0_i32_1 = arith.constant 0 : i32
    return %c0_i32, %c0_i32_0 : i32, i32
  }
  func.func @transform_12(%arg0: i32) -> (i32, i32) {
    %c0_i32 = arith.constant 0 : i32
    %c0_i32_0 = arith.constant 0 : i32
    %c0_i32_1 = arith.constant 0 : i32
    return %c0_i32, %c0_i32_0 : i32, i32
  }
  func.func @transform_13(%arg0: i32) -> (i32, i32) {
    %c0_i32 = arith.constant 0 : i32
    %c0_i32_0 = arith.constant 0 : i32
    %c0_i32_1 = arith.constant 0 : i32
    return %c0_i32, %c0_i32_0 : i32, i32
  }
  func.func @transform_14(%arg0: i32) -> (i32, i32) {
    %c0_i32 = arith.constant 0 : i32
    %c0_i32_0 = arith.constant 0 : i32
    %c0_i32_1 = arith.constant 0 : i32
    return %c0_i32, %c0_i32_0 : i32, i32
  }
  func.func @transform_15(%arg0: i32) -> (i32, i32) {
    %c0_i32 = arith.constant 0 : i32
    %c0_i32_0 = arith.constant 0 : i32
    %c0_i32_1 = arith.constant 0 : i32
    return %c0_i32, %c0_i32_0 : i32, i32
  }
  func.func @transform_16(%arg0: i32) -> (i32, i32) {
    %c0_i32 = arith.constant 0 : i32
    %c0_i32_0 = arith.constant 0 : i32
    return %arg0, %c0_i32 : i32, i32
  }
  func.func @transform_17(%arg0: i32) -> (i32, i32) {
    %c0_i32 = arith.constant 0 : i32
    %c0_i32_0 = arith.constant 0 : i32
    return %arg0, %c0_i32 : i32, i32
  }
  func.func @transform_18(%arg0: i32) -> (i32, i32) {
    %c0_i32 = arith.constant 0 : i32
    %c0_i32_0 = arith.constant 0 : i32
    return %arg0, %c0_i32 : i32, i32
  }
}

</mosaic_0001>

<llo_original>
// kernel: tpu_custom_call.1
$region0: #{tpu_custom_call.1}
  #allocation0 [shape = 'u32[]', space=smem, size = 0x4, offset = 0x4, fixed_abs, tag = 'smem constant byte address 0x4 - core index']
  #allocation1 [shape = 'u32[144,128]{1,0:T(1,128)}', space=vmem, size = 0x12000, scoped, tag = 'internal scratch']
  %s0 = inlined_call_operand.hbm [shape: f32[8,8], index: 0, kind: input, shape index: {}]
  %s1 = inlined_call_operand.hbm [shape: f32[8,32], index: 1, kind: input, shape index: {}]
  %s2 = inlined_call_operand.hbm [shape: f32[8,512], index: 2, kind: input, shape index: {}]
  %s3 = inlined_call_operand.hbm [shape: f32[8,512], index: 3, kind: input, shape index: {}]
  %s4 = inlined_call_operand.vmem [shape: f32[8,1], index: 4, kind: input, shape index: {}]
  %s5 = inlined_call_operand.vmem [shape: f32[8,256], index: 5, kind: input, shape index: {}]
  %s6 = inlined_call_operand.hbm [shape: f32[32,256], index: 6, kind: input, shape index: {}]
  %s7 = inlined_call_operand.vmem [shape: f32[1,256], index: 7, kind: input, shape index: {}]
  %s8 = inlined_call_operand.hbm [shape: f32[128,512], index: 8, kind: input, shape index: {}]
  %s9 = inlined_call_operand.hbm [shape: f32[128,512], index: 9, kind: input, shape index: {}]
  %s10 = inlined_call_operand.hbm [shape: f32[128,512], index: 10, kind: input, shape index: {}]
  %s11 = inlined_call_operand.hbm [shape: f32[512,128], index: 11, kind: input, shape index: {}]
  %s12 = inlined_call_operand.vmem [shape: f32[1,128], index: 12, kind: input, shape index: {}]
  %s13 = inlined_call_operand.vmem [shape: f32[1,128], index: 13, kind: input, shape index: {}]
  %s14 = inlined_call_operand.hbm [shape: f32[128,128], index: 14, kind: input, shape index: {}]
  %s15 = inlined_call_operand.vmem [shape: f32[1,128], index: 15, kind: input, shape index: {}]
  %s16 = inlined_call_operand.hbm [shape: f32[8,128], index: 16, kind: output, shape index: {0}]
  %s17 = inlined_call_operand.hbm [shape: f32[8,512], index: 17, kind: output, shape index: {1}]
  %s18 = inlined_call_operand.hbm [shape: f32[8,512], index: 18, kind: output, shape index: {2}]
  %19 = xla_tuple %s16, %s17, %s18
  %s20 = sld [smem:[#allocation0]]
  $region130: #{tpu_custom_call.1} parent=0
    _
  %s22 = ssub.s32 1, %s20
  %s23 = scalar_select 0, %s22, %s20
  $region1: #{tpu_custom_call.1} parent=0
    #allocation2 [shape = 'u8[4096]{0}', space=vmem, size = 0x1000, scoped, tag = 'input window, operand 0, single buffered']
    #allocation3 [shape = 's32[1]{0}', space=sflag, size = 0x4, scoped, tag = 'scoped memory for tpu_custom_call.1']
    #allocation4 [shape = 's32[1]{0}', space=sflag, size = 0x4, scoped, tag = 'scoped memory for tpu_custom_call.1']
    #allocation5 [shape = 'u8[4096]{0}', space=vmem, size = 0x1000, scoped, tag = 'input window, operand 1, single buffered']
    #allocation6 [shape = 's32[1]{0}', space=sflag, size = 0x4, scoped, tag = 'scoped memory for tpu_custom_call.1']
    #allocation7 [shape = 'u8[16384]{0}', space=vmem, size = 0x4000, scoped, tag = 'input window, operand 2, single buffered']
    #allocation8 [shape = 'u8[16384]{0}', space=vmem, size = 0x4000, scoped, tag = 'input window, operand 3, single buffered']
    #allocation9 [shape = 's32[1]{0}', space=sflag, size = 0x4, scoped, tag = 'scoped memory for tpu_custom_call.1']
    #allocation10 [shape = 'u8[32768]{0}', space=vmem, size = 0x8000, scoped, tag = 'input window, operand 6, single buffered']
    #allocation11 [shape = 'u8[262144]{0}', space=vmem, size = 0x40000, scoped, tag = 'input window, operand 8, single buffered']
    #allocation12 [shape = 's32[1]{0}', space=sflag, size = 0x4, scoped, tag = 'scoped memory for tpu_custom_call.1']
    #allocation13 [shape = 'u8[262144]{0}', space=vmem, size = 0x40000, scoped, tag = 'input window, operand 9, single buffered']
    #allocation14 [shape = 'u8[262144]{0}', space=vmem, size = 0x40000, scoped, tag = 'input window, operand 10, single buffered']
    #allocation15 [shape = 's32[1]{0}', space=sflag, size = 0x4, scoped, tag = 'scoped memory for tpu_custom_call.1']
    #allocation16 [shape = 'u8[262144]{0}', space=vmem, size = 0x40000, scoped, tag = 'input window, operand 11, single buffered']
    #allocation17 [shape = 'u8[65536]{0}', space=vmem, size = 0x10000, scoped, tag = 'input window, operand 14, single buffered']
    #allocation18 [shape = 's32[1]{0}', space=sflag, size = 0x4, scoped, tag = 'scoped memory for tpu_custom_call.1']
    #allocation19 [shape = 'u8[4096]{0}', space=vmem, size = 0x1000, scoped, tag = 'output window, operand 0, single buffered']
    #allocation20 [shape = 'u8[16384]{0}', space=vmem, size = 0x4000, scoped, tag = 'output window, operand 1, single buffered']
    #allocation21 [shape = 's32[1]{0}', space=sflag, size = 0x4, scoped, tag = 'scoped memory for tpu_custom_call.1']
    #allocation22 [shape = 'u8[16384]{0}', space=vmem, size = 0x4000, scoped, tag = 'output window, operand 2, single buffered']
    %24 = vsyncpa [#allocation3], 0
    %25 = vsyncpa [#allocation6], 0
    %26 = vsyncpa [#allocation9], 0
    %27 = vsyncpa [#allocation12], 0
    %28 = vsyncpa [#allocation15], 0
    %29 = vsyncpa [#allocation18], 0
    %30 = vsyncpa [#allocation4], 0
    %31 = vsyncpa [#allocation21], 0
    // Predicated region
    $region2: #{tpu_custom_call.1} parent=1 // pred_check
      _
    $region3: #{tpu_custom_call.1} parent=1 // pred_check_branch
      %33 = sbr.rel (0) target = $region5
    $region4: #{tpu_custom_call.1} parent=1 // pred_region
      %s35 = ssub.s32 128, 128
      %36 = vsyncadd [#allocation3], %s35
      %s38 = sshll.u32 [#allocation2], 4
      %s39 = int_to_ptr.vmem [resolvable:$true] %s38
      %41 = dma.hbm_to_vmem [thread:$0]  %s0, 128, %s39, [#allocation3]
    $region5: #{tpu_custom_call.1} parent=1 // pred_fallthru
      _
    // Predicated region
    $region6: #{tpu_custom_call.1} parent=1 // pred_check
      _
    $region7: #{tpu_custom_call.1} parent=1 // pred_check_branch
      %43 = sbr.rel (0) target = $region9
    $region8: #{tpu_custom_call.1} parent=1 // pred_region
      %s45 = ssub.s32 128, 128
      %46 = vsyncadd [#allocation6], %s45
      %s48 = sshll.u32 [#allocation5], 4
      %s49 = int_to_ptr.vmem [resolvable:$true] %s48
      %51 = dma.hbm_to_vmem [thread:$0]  %s1, 128, %s49, [#allocation6]
    $region9: #{tpu_custom_call.1} parent=1 // pred_fallthru
      _
    // Predicated region
    $region10: #{tpu_custom_call.1} parent=1 // pred_check
      _
    $region11: #{tpu_custom_call.1} parent=1 // pred_check_branch
      %53 = sbr.rel (0) target = $region13
    $region12: #{tpu_custom_call.1} parent=1 // pred_region
      %s55 = ssub.s32 512, 512
      %56 = vsyncadd [#allocation6], %s55
      %s58 = sshll.u32 [#allocation7], 4
      %s59 = int_to_ptr.vmem [resolvable:$true] %s58
      %61 = dma.hbm_to_vmem [thread:$0]  %s2, 512, %s59, [#allocation6]
    $region13: #{tpu_custom_call.1} parent=1 // pred_fallthru
      _
    // Predicated region
    $region14: #{tpu_custom_call.1} parent=1 // pred_check
      _
    $region15: #{tpu_custom_call.1} parent=1 // pred_check_branch
      %63 = sbr.rel (0) target = $region17
    $region16: #{tpu_custom_call.1} parent=1 // pred_region
      %s65 = ssub.s32 512, 512
      %66 = vsyncadd [#allocation9], %s65
      %s68 = sshll.u32 [#allocation8], 4
      %s69 = int_to_ptr.vmem [resolvable:$true] %s68
      %71 = dma.hbm_to_vmem [thread:$0]  %s3, 512, %s69, [#allocation9]
    $region17: #{tpu_custom_call.1} parent=1 // pred_fallthru
      _
    // Predicated region
    $region18: #{tpu_custom_call.1} parent=1 // pred_check
      _
    $region19: #{tpu_custom_call.1} parent=1 // pred_check_branch
      %73 = sbr.rel (0) target = $region21
    $region20: #{tpu_custom_call.1} parent=1 // pred_region
      _
    $region21: #{tpu_custom_call.1} parent=1 // pred_fallthru
      _
    // Predicated region
    $region22: #{tpu_custom_call.1} parent=1 // pred_check
      _
    $region23: #{tpu_custom_call.1} parent=1 // pred_check_branch
      %75 = sbr.rel (0) target = $region25
    $region24: #{tpu_custom_call.1} parent=1 // pred_region
      _
    $region25: #{tpu_custom_call.1} parent=1 // pred_fallthru
      _
    // Predicated region
    $region26: #{tpu_custom_call.1} parent=1 // pred_check
      _
    $region27: #{tpu_custom_call.1} parent=1 // pred_check_branch
      %77 = sbr.rel (0) target = $region29
    $region28: #{tpu_custom_call.1} parent=1 // pred_region
      %s79 = ssub.s32 1024, 1024
      %80 = vsyncadd [#allocation9], %s79
      %s81 = sshll.u32 [#allocation10], 4
      %s82 = int_to_ptr.vmem [resolvable:$true] %s81
      %87 = dma.hbm_to_vmem [thread:$0]  %s6, 1024, %s82, [#allocation9], 256, 256, 16
    $region29: #{tpu_custom_call.1} parent=1 // pred_fallthru
      _
    // Predicated region
    $region30: #{tpu_custom_call.1} parent=1 // pred_check
      _
    $region31: #{tpu_custom_call.1} parent=1 // pred_check_branch
      %89 = sbr.rel (0) target = $region33
    $region32: #{tpu_custom_call.1} parent=1 // pred_region
      _
    $region33: #{tpu_custom_call.1} parent=1 // pred_fallthru
      _
    // Predicated region
    $region34: #{tpu_custom_call.1} parent=1 // pred_check
      _
    $region35: #{tpu_custom_call.1} parent=1 // pred_check_branch
      %91 = sbr.rel (0) target = $region37
    $region36: #{tpu_custom_call.1} parent=1 // pred_region
      %s93 = ssub.s32 8192, 8192
      %94 = vsyncadd [#allocation12], %s93
      %s95 = sshll.u32 [#allocation11], 4
      %s96 = int_to_ptr.vmem [resolvable:$true] %s95
      %101 = dma.hbm_to_vmem [thread:$0]  %s8, 8192, %s96, [#allocation12], 512, 512, 32
    $region37: #{tpu_custom_call.1} parent=1 // pred_fallthru
      _
    // Predicated region
    $region38: #{tpu_custom_call.1} parent=1 // pred_check
      _
    $region39: #{tpu_custom_call.1} parent=1 // pred_check_branch
      %103 = sbr.rel (0) target = $region41
    $region40: #{tpu_custom_call.1} parent=1 // pred_region
      %s105 = ssub.s32 8192, 8192
      %106 = vsyncadd [#allocation12], %s105
      %s107 = sshll.u32 [#allocation13], 4
      %s108 = int_to_ptr.vmem [resolvable:$true] %s107
      %113 = dma.hbm_to_vmem [thread:$0]  %s9, 8192, %s108, [#allocation12], 512, 512, 32
    $region41: #{tpu_custom_call.1} parent=1 // pred_fallthru
      _
    // Predicated region
    $region42: #{tpu_custom_call.1} parent=1 // pred_check
      _
    $region43: #{tpu_custom_call.1} parent=1 // pred_check_branch
      %115 = sbr.rel (0) target = $region45
    $region44: #{tpu_custom_call.1} parent=1 // pred_region
      %s117 = ssub.s32 8192, 8192
      %118 = vsyncadd [#allocation15], %s117
      %s119 = sshll.u32 [#allocation14], 4
      %s120 = int_to_ptr.vmem [resolvable:$true] %s119
      %125 = dma.hbm_to_vmem [thread:$0]  %s10, 8192, %s120, [#allocation15], 512, 512, 32
    $region45: #{tpu_custom_call.1} parent=1 // pred_fallthru
      _
    // Predicated region
    $region46: #{tpu_custom_call.1} parent=1 // pred_check
      _
    $region47: #{tpu_custom_call.1} parent=1 // pred_check_branch
      %127 = sbr.rel (0) target = $region49
    $region48: #{tpu_custom_call.1} parent=1 // pred_region
      %s129 = ssub.s32 8192, 8192
      %130 = vsyncadd [#allocation15], %s129
      %s131 = sshll.u32 [#allocation16], 4
      %s132 = int_to_ptr.vmem [resolvable:$true] %s131
      %137 = dma.hbm_to_vmem [thread:$0]  %s11, 8192, %s132, [#allocation15], 128, 128, 8
    $region49: #{tpu_custom_call.1} parent=1 // pred_fallthru
      _
    // Predicated region
    $region50: #{tpu_custom_call.1} parent=1 // pred_check
      _
    $region51: #{tpu_custom_call.1} parent=1 // pred_check_branch
      %139 = sbr.rel (0) target = $region53
    $region52: #{tpu_custom_call.1} parent=1 // pred_region
      _
    $region53: #{tpu_custom_call.1} parent=1 // pred_fallthru
      _
    // Predicated region
    $region54: #{tpu_custom_call.1} parent=1 // pred_check
      _
    $region55: #{tpu_custom_call.1} parent=1 // pred_check_branch
      %141 = sbr.rel (0) target = $region57
    $region56: #{tpu_custom_call.1} parent=1 // pred_region
      _
    $region57: #{tpu_custom_call.1} parent=1 // pred_fallthru
      _
    // Predicated region
    $region58: #{tpu_custom_call.1} parent=1 // pred_check
      _
    $region59: #{tpu_custom_call.1} parent=1 // pred_check_branch
      %143 = sbr.rel (0) target = $region61
    $region60: #{tpu_custom_call.1} parent=1 // pred_region
      %s145 = ssub.s32 2048, 2048
      %146 = vsyncadd [#allocation18], %s145
      %s147 = sshll.u32 [#allocation17], 4
      %s148 = int_to_ptr.vmem [resolvable:$true] %s147
      %153 = dma.hbm_to_vmem [thread:$0]  %s14, 2048, %s148, [#allocation18], 128, 128, 8
    $region61: #{tpu_custom_call.1} parent=1 // pred_fallthru
      _
    // Predicated region
    $region62: #{tpu_custom_call.1} parent=1 // pred_check
      _
    $region63: #{tpu_custom_call.1} parent=1 // pred_check_branch
      %155 = sbr.rel (0) target = $region65
    $region64: #{tpu_custom_call.1} parent=1 // pred_region
      _
    $region65: #{tpu_custom_call.1} parent=1 // pred_fallthru
      _
    // Predicated region
    $region66: #{tpu_custom_call.1} parent=1 // pred_check
      _
    $region67: #{tpu_custom_call.1} parent=1 // pred_check_branch
      %157 = sbr.rel (0) target = $region69
    $region68: #{tpu_custom_call.1} parent=1 // pred_region
      %158 = dma.done [#allocation3], 128
    $region69: #{tpu_custom_call.1} parent=1 // pred_fallthru
      _
    // Predicated region
    $region70: #{tpu_custom_call.1} parent=1 // pred_check
      _
    $region71: #{tpu_custom_call.1} parent=1 // pred_check_branch
      %160 = sbr.rel (0) target = $region73
    $region72: #{tpu_custom_call.1} parent=1 // pred_region
      %161 = dma.done [#allocation6], 128
    $region73: #{tpu_custom_call.1} parent=1 // pred_fallthru
      _
    // Predicated region
    $region74: #{tpu_custom_call.1} parent=1 // pred_check
      _
    $region75: #{tpu_custom_call.1} parent=1 // pred_check_branch
      %163 = sbr.rel (0) target = $region77
    $region76: #{tpu_custom_call.1} parent=1 // pred_region
      %164 = dma.done [#allocation6], 512
    $region77: #{tpu_custom_call.1} parent=1 // pred_fallthru
      _
    // Predicated region
    $region78: #{tpu_custom_call.1} parent=1 // pred_check
      _
    $region79: #{tpu_custom_call.1} parent=1 // pred_check_branch
      %166 = sbr.rel (0) target = $region81
    $region80: #{tpu_custom_call.1} parent=1 // pred_region
      %167 = dma.done [#allocation9], 512
    $region81: #{tpu_custom_call.1} parent=1 // pred_fallthru
      _
    // Predicated region
    $region82: #{tpu_custom_call.1} parent=1 // pred_check
      _
    $region83: #{tpu_custom_call.1} parent=1 // pred_check_branch
      %169 = sbr.rel (0) target = $region85
    $region84: #{tpu_custom_call.1} parent=1 // pred_region
      %170 = dma.done [#allocation9], 1024
    $region85: #{tpu_custom_call.1} parent=1 // pred_fallthru
      _
    // Predicated region
    $region86: #{tpu_custom_call.1} parent=1 // pred_check
      _
    $region87: #{tpu_custom_call.1} parent=1 // pred_check_branch
      %172 = sbr.rel (0) target = $region89
    $region88: #{tpu_custom_call.1} parent=1 // pred_region
      %173 = dma.done [#allocation12], 8192
    $region89: #{tpu_custom_call.1} parent=1 // pred_fallthru
      _
    // Predicated region
    $region90: #{tpu_custom_call.1} parent=1 // pred_check
      _
    $region91: #{tpu_custom_call.1} parent=1 // pred_check_branch
      %175 = sbr.rel (0) target = $region93
    $region92: #{tpu_custom_call.1} parent=1 // pred_region
      %176 = dma.done [#allocation12], 8192
    $region93: #{tpu_custom_call.1} parent=1 // pred_fallthru
      _
    // Predicated region
    $region94: #{tpu_custom_call.1} parent=1 // pred_check
      _
    $region95: #{tpu_custom_call.1} parent=1 // pred_check_branch
      %178 = sbr.rel (0) target = $region97
    $region96: #{tpu_custom_call.1} parent=1 // pred_region
      %179 = dma.done [#allocation15], 8192
    $region97: #{tpu_custom_call.1} parent=1 // pred_fallthru
      _
    // Predicated region
    $region98: #{tpu_custom_call.1} parent=1 // pred_check
      _
    $region99: #{tpu_custom_call.1} parent=1 // pred_check_branch
      %181 = sbr.rel (0) target = $region101
    $region100: #{tpu_custom_call.1} parent=1 // pred_region
      %182 = dma.done [#allocation15], 8192
    $region101: #{tpu_custom_call.1} parent=1 // pred_fallthru
      _
    // Predicated region
    $region102: #{tpu_custom_call.1} parent=1 // pred_check
      _
    $region103: #{tpu_custom_call.1} parent=1 // pred_check_branch
      %184 = sbr.rel (0) target = $region105
    $region104: #{tpu_custom_call.1} parent=1 // pred_region
      %185 = dma.done [#allocation18], 2048
    $region105: #{tpu_custom_call.1} parent=1 // pred_fallthru
      _
    %v186 = vld [vmem:[#allocation2] sm:$0xff]
    %v187 = vld [vmem:[#allocation5] sm:$0xff]
    %v188 = vld [vmem:[#allocation7] sm:$0xff]
    %v189 = vld [vmem:[#allocation7 + $0x8] sm:$0xff]
    %v190 = vld [vmem:[#allocation7 + $0x10] sm:$0xff]
    %v191 = vld [vmem:[#allocation7 + $0x18] sm:$0xff]
    %v192 = vld [vmem:[#allocation8] sm:$0xff]
    %v193 = vld [vmem:[#allocation8 + $0x8] sm:$0xff]
    %v194 = vld [vmem:[#allocation8 + $0x10] sm:$0xff]
    %v195 = vld [vmem:[#allocation8 + $0x18] sm:$0xff]
    %v196 = vld [vmem:[%s4] sm:$0xff]
    %v197 = vld [vmem:[%s5] sm:$0xff]
    %v198 = vld [vmem:[%s5 + $0x8] sm:$0xff]
    %v199 = vld [vmem:[#allocation10] sm:$0xff]
    %v200 = vld [vmem:[#allocation10 + $0x8] sm:$0xff]
    %v201 = vld [vmem:[#allocation10 + $0x10] sm:$0xff]
    %v202 = vld [vmem:[#allocation10 + $0x18] sm:$0xff]
    %v203 = vld [vmem:[#allocation10 + $0x20] sm:$0xff]
    %v204 = vld [vmem:[#allocation10 + $0x28] sm:$0xff]
    %v205 = vld [vmem:[#allocation10 + $0x30] sm:$0xff]
    %v206 = vld [vmem:[#allocation10 + $0x38] sm:$0xff]
    %vm207 = vcmask 261120
    %v209 = vsel %vm207, %v187, 0
    %211 = vmatprep.subr.mxu0 0.0
    %212 = vmatpush1.msra.mxu0 0.0
    %213 = vmatprep.subr.mxu0 0.0
    %214 = vmatpush1.msra.mxu0 0.0
    %215 = vmatprep.subr.mxu0 0.0
    %216 = vmatpush1.msra.mxu0 0.0
    %217 = vmatprep.subr.mxu0 0.0
    %218 = vmatpush1.msra.mxu0 0.0
    %219 = vmatprep.subr.mxu0 0.0
    %220 = vmatpush1.msra.mxu0 0.0
    %221 = vmatprep.subr.mxu0 0.0
    %222 = vmatpush1.msra.mxu0 0.0
    %223 = vmatprep.subr.mxu0 0.0
    %224 = vmatpush1.msra.mxu0 0.0
    %225 = vmatprep.subr.mxu0 0.0
    %226 = vmatpush1.msra.mxu0 0.0
    %227 = vmatprep.subr.mxu0 0.0
    %228 = vmatpush1.msra.mxu0 0.0
    %229 = vmatprep.subr.mxu0 0.0
    %230 = vmatpush1.msra.mxu0 0.0
    %231 = vmatprep.subr.mxu0 0.0
    %232 = vmatpush1.msra.mxu0 0.0
    %233 = vmatprep.subr.mxu0 0.0
    %234 = vmatpush1.msra.mxu0 0.0
    %235 = vmatprep.subr.mxu0 %v206
    %236 = vmatpush1.msra.mxu0 %v205
    %237 = vmatprep.subr.mxu0 %v204
    %238 = vmatpush1.msra.mxu0 %v203
    %239 = vmatprep.subr.mxu0 %v202
    %240 = vmatpush1.msra.mxu0 %v201
    %241 = vmatprep.subr.mxu0 %v200
    %242 = vmatpush1.msra.mxu0 %v199
    %243 = vmatprep.subr.mxu0 0.0
    %244 = vmatpush2.msra.mxu0 0.0
    %245 = vmatprep.subr.mxu0 0.0
    %246 = vmatpush2.msra.mxu0 0.0
    %247 = vmatprep.subr.mxu0 0.0
    %248 = vmatpush2.msra.mxu0 0.0
    %249 = vmatprep.subr.mxu0 0.0
    %250 = vmatpush2.msra.mxu0 0.0
    %251 = vmatprep.subr.mxu0 0.0
    %252 = vmatpush2.msra.mxu0 0.0
    %253 = vmatprep.subr.mxu0 0.0
    %254 = vmatpush2.msra.mxu0 0.0
    %255 = vmatprep.subr.mxu0 0.0
    %256 = vmatpush2.msra.mxu0 0.0
    %257 = vmatprep.subr.mxu0 0.0
    %258 = vmatpush2.msra.mxu0 0.0
    %259 = vmatprep.subr.mxu0 0.0
    %260 = vmatpush2.msra.mxu0 0.0
    %261 = vmatprep.subr.mxu0 0.0
    %262 = vmatpush2.msra.mxu0 0.0
    %263 = vmatprep.subr.mxu0 0.0
    %264 = vmatpush2.msra.mxu0 0.0
    %265 = vmatprep.subr.mxu0 0.0
    %266 = vmatpush2.msra.mxu0 0.0
    %267 = vmatprep.subr.mxu0 0.0
    %268 = vmatpush2.msra.mxu0 0.0
    %269 = vmatprep.subr.mxu0 0.0
    %270 = vmatpush2.msra.mxu0 0.0
    %271 = vmatprep.subr.mxu0 0.0
    %272 = vmatpush2.msra.mxu0 0.0
    %273 = vmatprep.subr.mxu0 0.0
    %274 = vmatpush2.msra.mxu0 0.0
    %275 = vmatprep.mubr.f32.mxu0 0.0
    %276 = vmatmul.mubr.f32.gmra.mxu0 %v209
    %v277 = vpop.f32.mrf.mxu0
    %v278 = vadd.f32 0.0, %v277
    %v279 = vpop.f32.mrf.mxu0
    %v280 = vadd.f32 0.0, %v279
    %281 = vdwg.mxu0
    %vm282 = vcmask 64512
    %v284 = vsel %vm282, %v186, 0
    %286 = vmatprep.subr.mxu0 0.0
    %287 = vmatpush1.msra.mxu0 0.0
    %288 = vmatprep.subr.mxu0 0.0
    %289 = vmatpush1.msra.mxu0 0.0
    %290 = vmatprep.subr.mxu0 0.0
    %291 = vmatpush1.msra.mxu0 0.0
    %292 = vmatprep.subr.mxu0 0.0
    %293 = vmatpush1.msra.mxu0 0.0
    %294 = vmatprep.subr.mxu0 0.0
    %295 = vmatpush1.msra.mxu0 0.0
    %296 = vmatprep.subr.mxu0 0.0
    %297 = vmatpush1.msra.mxu0 0.0
    %298 = vmatprep.subr.mxu0 0.0
    %299 = vmatpush1.msra.mxu0 0.0
    %300 = vmatprep.subr.mxu0 0.0
    %301 = vmatpush1.msra.mxu0 0.0
    %302 = vmatprep.subr.mxu0 0.0
    %303 = vmatpush1.msra.mxu0 0.0
    %304 = vmatprep.subr.mxu0 0.0
    %305 = vmatpush1.msra.mxu0 0.0
    %306 = vmatprep.subr.mxu0 0.0
    %307 = vmatpush1.msra.mxu0 0.0
    %308 = vmatprep.subr.mxu0 0.0
    %309 = vmatpush1.msra.mxu0 0.0
    %310 = vmatprep.subr.mxu0 0.0
    %311 = vmatpush1.msra.mxu0 0.0
    %312 = vmatprep.subr.mxu0 0.0
    %313 = vmatpush1.msra.mxu0 0.0
    %314 = vmatprep.subr.mxu0 0.0
    %315 = vmatpush1.msra.mxu0 0.0
    %316 = vmatprep.subr.mxu0 %v198
    %317 = vmatpush1.msra.mxu0 %v197
    %318 = vmatprep.subr.mxu0 0.0
    %319 = vmatpush2.msra.mxu0 0.0
    %320 = vmatprep.subr.mxu0 0.0
    %321 = vmatpush2.msra.mxu0 0.0
    %322 = vmatprep.subr.mxu0 0.0
    %323 = vmatpush2.msra.mxu0 0.0
    %324 = vmatprep.subr.mxu0 0.0
    %325 = vmatpush2.msra.mxu0 0.0
    %326 = vmatprep.subr.mxu0 0.0
    %327 = vmatpush2.msra.mxu0 0.0
    %328 = vmatprep.subr.mxu0 0.0
    %329 = vmatpush2.msra.mxu0 0.0
    %330 = vmatprep.subr.mxu0 0.0
    %331 = vmatpush2.msra.mxu0 0.0
    %332 = vmatprep.subr.mxu0 0.0
    %333 = vmatpush2.msra.mxu0 0.0
    %334 = vmatprep.subr.mxu0 0.0
    %335 = vmatpush2.msra.mxu0 0.0
    %336 = vmatprep.subr.mxu0 0.0
    %337 = vmatpush2.msra.mxu0 0.0
    %338 = vmatprep.subr.mxu0 0.0
    %339 = vmatpush2.msra.mxu0 0.0
    %340 = vmatprep.subr.mxu0 0.0
    %341 = vmatpush2.msra.mxu0 0.0
    %342 = vmatprep.subr.mxu0 0.0
    %343 = vmatpush2.msra.mxu0 0.0
    %344 = vmatprep.subr.mxu0 0.0
    %345 = vmatpush2.msra.mxu0 0.0
    %346 = vmatprep.subr.mxu0 0.0
    %347 = vmatpush2.msra.mxu0 0.0
    %348 = vmatprep.subr.mxu0 0.0
    %349 = vmatpush2.msra.mxu0 0.0
    %350 = vmatprep.mubr.f32.mxu0 0.0
    %351 = vmatmul.mubr.f32.gmra.mxu0 %v284
    %v352 = vpop.f32.mrf.mxu0
    %v353 = vadd.f32 %v278, %v352
    %v354 = vpop.f32.mrf.mxu0
    %v355 = vadd.f32 %v280, %v354
    %356 = vdwg.mxu0
    %v357 = vld [vmem:[%s7] sm:$0x3]
    %v359 = vlaneseq
    %v360 = vshrl.u32 %v359, 7
    %v361 = vsub.s32 0, %v360
    %v362 = vrot.slane %v357, %v361
    %v363 = vlaneseq
    %v364 = vshrl.u32 %v363, 7
    %v365 = vsub.s32 1, %v364
    %v366 = vrot.slane %v357, %v365
    %v369 = vadd.f32 %v353, %v362
    %v370 = vadd.f32 %v355, %v366
    %v371 = vxor.u32 %v369, 2147483648
    %v372 = vmul.f32 %v371, 1.442695
    %v373 = vpow.pop %v372
    %v374 = vadd.f32 %v373, 1.0
    %v375 = vrcp.pop %v374
    %v376 = vmul.f32 1.0, %v375
    %v377 = vtanh.pop %v370
    %v378 = vld [vmem:[%s13] sm:$0x1]
    %380 = vset.pattern.permute.xlu0 0
    %381 = vperm.xlu0 %380, %v196
    %v382 = vpop.permute.xlu0 %381
    %v385 = vlaneseq
    %v386 = vshrl.u32 %v385, 7
    %v387 = vsub.s32 0, %v386
    %v388 = vrot.slane %v378, %v387
    %v390 = vmul.f32 %v382, %v388
    %v391 = vand.u32 2147483647, %v390
    %vm392 = vcmp.le.f32.partialorder %v391, 0.7853982
    %vm393 = vcmp.lt.s32.totalorder %v390, 0
    %v394 = vand.u32 %v390, 2139095040
    %v395 = vshrl.u32 %v394, 23
    %v396 = vsub.s32 %v395, 127
    %v397 = vand.u32 2147483647, %v390
    %v398 = vand.u32 %v397, 8388607
    %v399 = vor.u32 %v398, 8388608
    %v400 = vsub.s32 0, %v399
    %v401 = vadd.s32 %v396, 1
    %vm402 = vcmp.gt.s32.totalorder %v401, 0
    %v403 = vsel %vm402, %v401, 0
    %v404 = vshrl.u32 %v403, 5
    %v405 = vand.u32 %v403, 31
    %v406 = vsub.s32 32, %v405
    %v407 = vshrl.u32 683565275, %v406
    %v408 = vshll.u32 683565275, %v405
    %v409 = vshrl.u32 2475754826, %v406
    %v410 = vor.u32 %v408, %v409
    %v411 = vshll.u32 2475754826, %v405
    %v412 = vshrl.u32 2131351028, %v406
    %v413 = vor.u32 %v411, %v412
    %v414 = vshll.u32 2131351028, %v405
    %v415 = vshrl.u32 2102212464, %v406
    %v416 = vor.u32 %v414, %v415
    %v417 = vshll.u32 2102212464, %v405
    %v418 = vshrl.u32 920167782, %v406
    %v419 = vor.u32 %v417, %v418
    %v420 = vshll.u32 920167782, %v405
    %v421 = vshrl.u32 1326507024, %v406
    %v422 = vor.u32 %v420, %v421
    %vm423 = vcmp.lt.s32.totalorder %v404, 1
    %vm424 = vcmp.lt.s32.totalorder %v404, 2
    %vm425 = vcmp.lt.s32.totalorder %v404, 3
    %vm426 = vcmp.lt.s32.totalorder %v404, 4
    %v427 = vsel %vm423, %v407, %v410
    %v428 = vsel %vm426, %v416, 2102212464
    %v429 = vsel %vm425, %v413, %v428
    %v430 = vsel %vm424, %v427, %v429
    %v431 = vsel %vm423, %v410, %v413
    %v432 = vsel %vm426, %v419, 920167782
    %v433 = vsel %vm425, %v416, %v432
    %v434 = vsel %vm424, %v431, %v433
    %v435 = vsel %vm423, %v413, %v416
    %v436 = vsel %vm426, %v422, 1326507024
    %v437 = vsel %vm425, %v419, %v436
    %v438 = vsel %vm424, %v435, %v437
    %v439 = vshll.u32 %v399, 8
    %v440 = vmul.u32.u64.compose %v439, %v438
    %v441 = vextract.low.u32 %v440
    %v442 = vextract.high.u32 %v440
    %v443 = vmul.u32.u64.compose %v439, %v434
    %v444 = vextract.low.u32 %v443
    %v445 = vextract.high.u32 %v443
    %v446 = vmul.u32 %v439, %v430
    %v447 = vadd.s32 %v442, %v444
    %vm448 = vc.u32 %v442, %v444
    %v449 = vadd.s32 %v445, 1
    %v450 = vsel %vm448, %v449, %v445
    %v451 = vadd.s32 %v446, %v450
    %v452 = vadd.s32 %v451, 536870912
    %v453 = vshrl.u32 %v452, 30
    %v454 = vshll.u32 %v453, 30
    %v455 = vsub.s32 %v451, %v454
    %vm456 = vcmp.lt.s32.totalorder %v455, 0
    %v457 = vsub.s32 0, %v455
    %v458 = vsel %vm456, %v457, %v455
    %v459 = vclz %v458
    %v460 = vsub.s32 %v459, 2
    %vm461 = vcmp.gt.s32.totalorder 0, %v460
    %v462 = vsel %vm461, 0, %v460
    %v463 = vsub.s32 32, %v462
    %v464 = vshll.u32 %v455, %v462
    %v465 = vshrl.u32 %v447, %v463
    %v466 = vor.u32 %v464, %v465
    %v467 = vsub.s32 4294967266, %v462
    %v468 = vadd.s32 %v467, 127
    %v469 = vshll.u32 %v468, 23
    %v470 = vor.u32 4788187, %v469
    %v471 = vand.u32 2147483647, %v470
    %v473 = vcvt.s32.f32 %v466
    %v474 = vmul.f32 %v473, %v471
    %v475 = vxor.u32 %v474, 2147483648
    %v476 = vsel %vm393, %v475, %v474
    %v477 = vsub.s32 4, %v453
    %v478 = vsel %vm393, %v477, %v453
    %v479 = vsel %vm392, %v390, %v476
    %v480 = vsel %vm392, 0, %v478
    %v481 = vcosq.f32.pop %v479
    %v482 = vsinq.f32.pop %v479
    %vm483 = vweird.f32 %v390
    %v484 = vand.u32 %v480, 3
    %vm485 = vcmp.lt.s32.totalorder %v484, 2
    %vm486 = vcmp.eq.s32.totalorder %v484, 0
    %v487 = vxor.u32 %v482, 2147483648
    %v488 = vsel %vm486, %v481, %v487
    %vm489 = vcmp.eq.s32.totalorder %v484, 2
    %v490 = vxor.u32 %v481, 2147483648
    %v491 = vsel %vm489, %v490, %v482
    %v492 = vsel %vm485, %v488, %v491
    %v493 = vsel %vm483, nan, %v492
    %v494 = vand.u32 2147483647, %v390
    %vm495 = vcmp.le.f32.partialorder %v494, 0.7853982
    %vm496 = vcmp.lt.s32.totalorder %v390, 0
    %v497 = vand.u32 %v390, 2139095040
    %v498 = vshrl.u32 %v497, 23
    %v499 = vsub.s32 %v498, 127
    %v500 = vand.u32 2147483647, %v390
    %v501 = vand.u32 %v500, 8388607
    %v502 = vor.u32 %v501, 8388608
    %v503 = vsub.s32 0, %v502
    %v504 = vadd.s32 %v499, 1
    %vm505 = vcmp.gt.s32.totalorder %v504, 0
    %v506 = vsel %vm505, %v504, 0
    %v507 = vshrl.u32 %v506, 5
    %v508 = vand.u32 %v506, 31
    %v509 = vsub.s32 32, %v508
    %v510 = vshrl.u32 683565275, %v509
    %v511 = vshll.u32 683565275, %v508
    %v512 = vshrl.u32 2475754826, %v509
    %v513 = vor.u32 %v511, %v512
    %v514 = vshll.u32 2475754826, %v508
    %v515 = vshrl.u32 2131351028, %v509
    %v516 = vor.u32 %v514, %v515
    %v517 = vshll.u32 2131351028, %v508
    %v518 = vshrl.u32 2102212464, %v509
    %v519 = vor.u32 %v517, %v518
    %v520 = vshll.u32 2102212464, %v508
    %v521 = vshrl.u32 920167782, %v509
    %v522 = vor.u32 %v520, %v521
    %v523 = vshll.u32 920167782, %v508
    %v524 = vshrl.u32 1326507024, %v509
    %v525 = vor.u32 %v523, %v524
    %vm526 = vcmp.lt.s32.totalorder %v507, 1
    %vm527 = vcmp.lt.s32.totalorder %v507, 2
    %vm528 = vcmp.lt.s32.totalorder %v507, 3
    %vm529 = vcmp.lt.s32.totalorder %v507, 4
    %v530 = vsel %vm526, %v510, %v513
    %v531 = vsel %vm529, %v519, 2102212464
    %v532 = vsel %vm528, %v516, %v531
    %v533 = vsel %vm527, %v530, %v532
    %v534 = vsel %vm526, %v513, %v516
    %v535 = vsel %vm529, %v522, 920167782
    %v536 = vsel %vm528, %v519, %v535
    %v537 = vsel %vm527, %v534, %v536
    %v538 = vsel %vm526, %v516, %v519
    %v539 = vsel %vm529, %v525, 1326507024
    %v540 = vsel %vm528, %v522, %v539
    %v541 = vsel %vm527, %v538, %v540
    %v542 = vshll.u32 %v502, 8
    %v543 = vmul.u32.u64.compose %v542, %v541
    %v544 = vextract.low.u32 %v543
    %v545 = vextract.high.u32 %v543
    %v546 = vmul.u32.u64.compose %v542, %v537
    %v547 = vextract.low.u32 %v546
    %v548 = vextract.high.u32 %v546
    %v549 = vmul.u32 %v542, %v533
    %v550 = vadd.s32 %v545, %v547
    %vm551 = vc.u32 %v545, %v547
    %v552 = vadd.s32 %v548, 1
    %v553 = vsel %vm551, %v552, %v548
    %v554 = vadd.s32 %v549, %v553
    %v555 = vadd.s32 %v554, 536870912
    %v556 = vshrl.u32 %v555, 30
    %v557 = vshll.u32 %v556, 30
    %v558 = vsub.s32 %v554, %v557
    %vm559 = vcmp.lt.s32.totalorder %v558, 0
    %v560 = vsub.s32 0, %v558
    %v561 = vsel %vm559, %v560, %v558
    %v562 = vclz %v561
    %v563 = vsub.s32 %v562, 2
    %vm564 = vcmp.gt.s32.totalorder 0, %v563
    %v565 = vsel %vm564, 0, %v563
    %v566 = vsub.s32 32, %v565
    %v567 = vshll.u32 %v558, %v565
    %v568 = vshrl.u32 %v550, %v566
    %v569 = vor.u32 %v567, %v568
    %v570 = vsub.s32 4294967266, %v565
    %v571 = vadd.s32 %v570, 127
    %v572 = vshll.u32 %v571, 23
    %v573 = vor.u32 4788187, %v572
    %v574 = vand.u32 2147483647, %v573
    %v576 = vcvt.s32.f32 %v569
    %v577 = vmul.f32 %v576, %v574
    %v578 = vxor.u32 %v577, 2147483648
    %v579 = vsel %vm496, %v578, %v577
    %v580 = vsub.s32 4, %v556
    %v581 = vsel %vm496, %v580, %v556
    %v582 = vsel %vm495, %v390, %v579
    %v583 = vsel %vm495, 0, %v581
    %v584 = vcosq.f32.pop %v582
    %v585 = vsinq.f32.pop %v582
    %vm586 = vweird.f32 %v390
    %v587 = vadd.s32 %v583, 3
    %v588 = vand.u32 %v587, 3
    %vm589 = vcmp.lt.s32.totalorder %v588, 2
    %vm590 = vcmp.eq.s32.totalorder %v588, 0
    %v591 = vxor.u32 %v585, 2147483648
    %v592 = vsel %vm590, %v584, %v591
    %vm593 = vcmp.eq.s32.totalorder %v588, 2
    %v594 = vxor.u32 %v584, 2147483648
    %v595 = vsel %vm593, %v594, %v585
    %v596 = vsel %vm589, %v592, %v595
    %v597 = vsel %vm586, nan, %v596
    %v598 = vld [vmem:[#allocation11] sm:$0xff]
    %v599 = vld [vmem:[#allocation11 + $0x8] sm:$0xff]
    %v600 = vld [vmem:[#allocation11 + $0x10] sm:$0xff]
    %v601 = vld [vmem:[#allocation11 + $0x18] sm:$0xff]
    %v602 = vld [vmem:[#allocation11 + $0x20] sm:$0xff]
    %v603 = vld [vmem:[#allocation11 + $0x28] sm:$0xff]
    %v604 = vld [vmem:[#allocation11 + $0x30] sm:$0xff]
    %v605 = vld [vmem:[#allocation11 + $0x38] sm:$0xff]
    %v606 = vld [vmem:[#allocation11 + $0x40] sm:$0xff]
    %v607 = vld [vmem:[#allocation11 + $0x48] sm:$0xff]
    %v608 = vld [vmem:[#allocation11 + $0x50] sm:$0xff]
    %v609 = vld [vmem:[#allocation11 + $0x58] sm:$0xff]
    %v610 = vld [vmem:[#allocation11 + $0x60] sm:$0xff]
    %v611 = vld [vmem:[#allocation11 + $0x68] sm:$0xff]
    %v612 = vld [vmem:[#allocation11 + $0x70] sm:$0xff]
    %v613 = vld [vmem:[#allocation11 + $0x78] sm:$0xff]
    %v614 = vld [vmem:[#allocation11 + $0x80] sm:$0xff]
    %v615 = vld [vmem:[#allocation11 + $0x88] sm:$0xff]
    %v616 = vld [vmem:[#allocation11 + $0x90] sm:$0xff]
    %v617 = vld [vmem:[#allocation11 + $0x98] sm:$0xff]
    %v618 = vld [vmem:[#allocation11 + $0xa0] sm:$0xff]
    %v619 = vld [vmem:[#allocation11 + $0xa8] sm:$0xff]
    %v620 = vld [vmem:[#allocation11 + $0xb0] sm:$0xff]
    %v621 = vld [vmem:[#allocation11 + $0xb8] sm:$0xff]
    %v622 = vld [vmem:[#allocation11 + $0xc0] sm:$0xff]
    %v623 = vld [vmem:[#allocation11 + $0xc8] sm:$0xff]
    %v624 = vld [vmem:[#allocation11 + $0xd0] sm:$0xff]
    %v625 = vld [vmem:[#allocation11 + $0xd8] sm:$0xff]
    %v626 = vld [vmem:[#allocation11 + $0xe0] sm:$0xff]
    %v627 = vld [vmem:[#allocation11 + $0xe8] sm:$0xff]
    %v628 = vld [vmem:[#allocation11 + $0xf0] sm:$0xff]
    %v629 = vld [vmem:[#allocation11 + $0xf8] sm:$0xff]
    %v630 = vld [vmem:[#allocation11 + $0x100] sm:$0xff]
    %v631 = vld [vmem:[#allocation11 + $0x108] sm:$0xff]
    %v632 = vld [vmem:[#allocation11 + $0x110] sm:$0xff]
    %v633 = vld [vmem:[#allocation11 + $0x118] sm:$0xff]
    %v634 = vld [vmem:[#allocation11 + $0x120] sm:$0xff]
    %v635 = vld [vmem:[#allocation11 + $0x128] sm:$0xff]
    %v636 = vld [vmem:[#allocation11 + $0x130] sm:$0xff]
    %v637 = vld [vmem:[#allocation11 + $0x138] sm:$0xff]
    %v638 = vld [vmem:[#allocation11 + $0x140] sm:$0xff]
    %v639 = vld [vmem:[#allocation11 + $0x148] sm:$0xff]
    %v640 = vld [vmem:[#allocation11 + $0x150] sm:$0xff]
    %v641 = vld [vmem:[#allocation11 + $0x158] sm:$0xff]
    %v642 = vld [vmem:[#allocation11 + $0x160] sm:$0xff]
    %v643 = vld [vmem:[#allocation11 + $0x168] sm:$0xff]
    %v644 = vld [vmem:[#allocation11 + $0x170] sm:$0xff]
    %v645 = vld [vmem:[#allocation11 + $0x178] sm:$0xff]
    %v646 = vld [vmem:[#allocation11 + $0x180] sm:$0xff]
    %v647 = vld [vmem:[#allocation11 + $0x188] sm:$0xff]
    %v648 = vld [vmem:[#allocation11 + $0x190] sm:$0xff]
    %v649 = vld [vmem:[#allocation11 + $0x198] sm:$0xff]
    %v650 = vld [vmem:[#allocation11 + $0x1a0] sm:$0xff]
    %v651 = vld [vmem:[#allocation11 + $0x1a8] sm:$0xff]
    %v652 = vld [vmem:[#allocation11 + $0x1b0] sm:$0xff]
    %v653 = vld [vmem:[#allocation11 + $0x1b8] sm:$0xff]
    %v654 = vld [vmem:[#allocation11 + $0x1c0] sm:$0xff]
    %v655 = vld [vmem:[#allocation11 + $0x1c8] sm:$0xff]
    %v656 = vld [vmem:[#allocation11 + $0x1d0] sm:$0xff]
    %v657 = vld [vmem:[#allocation11 + $0x1d8] sm:$0xff]
    %v658 = vld [vmem:[#allocation11 + $0x1e0] sm:$0xff]
    %v659 = vld [vmem:[#allocation11 + $0x1e8] sm:$0xff]
    %v660 = vld [vmem:[#allocation11 + $0x1f0] sm:$0xff]
    %v661 = vld [vmem:[#allocation11 + $0x1f8] sm:$0xff]
    %662 = vmatprep.subr.mxu0 %v659
    %663 = vmatpush1.msra.mxu0 %v658
    %664 = vmatprep.subr.mxu0 %v655
    %665 = vmatpush1.msra.mxu0 %v654
    %666 = vmatprep.subr.mxu0 %v651
    %667 = vmatpush1.msra.mxu0 %v650
    %668 = vmatprep.subr.mxu0 %v647
    %669 = vmatpush1.msra.mxu0 %v646
    %670 = vmatprep.subr.mxu0 %v643
    %671 = vmatpush1.msra.mxu0 %v642
    %672 = vmatprep.subr.mxu0 %v639
    %673 = vmatpush1.msra.mxu0 %v638
    %674 = vmatprep.subr.mxu0 %v635
    %675 = vmatpush1.msra.mxu0 %v634
    %676 = vmatprep.subr.mxu0 %v631
    %677 = vmatpush1.msra.mxu0 %v630
    %678 = vmatprep.subr.mxu0 %v627
    %679 = vmatpush1.msra.mxu0 %v626
    %680 = vmatprep.subr.mxu0 %v623
    %681 = vmatpush1.msra.mxu0 %v622
    %682 = vmatprep.subr.mxu0 %v619
    %683 = vmatpush1.msra.mxu0 %v618
    %684 = vmatprep.subr.mxu0 %v615
    %685 = vmatpush1.msra.mxu0 %v614
    %686 = vmatprep.subr.mxu0 %v611
    %687 = vmatpush1.msra.mxu0 %v610
    %688 = vmatprep.subr.mxu0 %v607
    %689 = vmatpush1.msra.mxu0 %v606
    %690 = vmatprep.subr.mxu0 %v603
    %691 = vmatpush1.msra.mxu0 %v602
    %692 = vmatprep.subr.mxu0 %v599
    %693 = vmatpush1.msra.mxu0 %v598
    %694 = vmatprep.subr.mxu0 0.0
    %695 = vmatpush2.msra.mxu0 0.0
    %696 = vmatprep.subr.mxu0 0.0
    %697 = vmatpush2.msra.mxu0 0.0
    %698 = vmatprep.subr.mxu0 0.0
    %699 = vmatpush2.msra.mxu0 0.0
    %700 = vmatprep.subr.mxu0 0.0
    %701 = vmatpush2.msra.mxu0 0.0
    %702 = vmatprep.subr.mxu0 0.0
    %703 = vmatpush2.msra.mxu0 0.0
    %704 = vmatprep.subr.mxu0 0.0
    %705 = vmatpush2.msra.mxu0 0.0
    %706 = vmatprep.subr.mxu0 0.0
    %707 = vmatpush2.msra.mxu0 0.0
    %708 = vmatprep.subr.mxu0 0.0
    %709 = vmatpush2.msra.mxu0 0.0
    %710 = vmatprep.subr.mxu0 0.0
    %711 = vmatpush2.msra.mxu0 0.0
    %712 = vmatprep.subr.mxu0 0.0
    %713 = vmatpush2.msra.mxu0 0.0
    %714 = vmatprep.subr.mxu0 0.0
    %715 = vmatpush2.msra.mxu0 0.0
    %716 = vmatprep.subr.mxu0 0.0
    %717 = vmatpush2.msra.mxu0 0.0
    %718 = vmatprep.subr.mxu0 0.0
    %719 = vmatpush2.msra.mxu0 0.0
    %720 = vmatprep.subr.mxu0 0.0
    %721 = vmatpush2.msra.mxu0 0.0
    %722 = vmatprep.subr.mxu0 0.0
    %723 = vmatpush2.msra.mxu0 0.0
    %724 = vmatprep.subr.mxu0 0.0
    %725 = vmatpush2.msra.mxu0 0.0
    %726 = vmatprep.mubr.f32.mxu0 0.0
    %727 = vmatmul.mubr.f32.gmra.mxu0 %v376
    %v728 = vpop.f32.mrf.mxu0
    %v729 = vadd.f32 0.0, %v728
    %v730 = vpop.f32.mrf.mxu0
    %v731 = vadd.f32 0.0, %v730
    %732 = vmatprep.mubr.f32.mxu0 0.0
    %733 = vmatmul.mubr.f32.gmra.mxu0 %v377
    %v734 = vpop.f32.mrf.mxu0
    %v735 = vadd.f32 0.0, %v734
    %v736 = vpop.f32.mrf.mxu0
    %v737 = vadd.f32 0.0, %v736
    %738 = vdwg.mxu0
    %739 = vmatprep.subr.mxu0 %v661
    %740 = vmatpush1.msra.mxu0 %v660
    %741 = vmatprep.subr.mxu0 %v657
    %742 = vmatpush1.msra.mxu0 %v656
    %743 = vmatprep.subr.mxu0 %v653
    %744 = vmatpush1.msra.mxu0 %v652
    %745 = vmatprep.subr.mxu0 %v649
    %746 = vmatpush1.msra.mxu0 %v648
    %747 = vmatprep.subr.mxu0 %v645
    %748 = vmatpush1.msra.mxu0 %v644
    %749 = vmatprep.subr.mxu0 %v641
    %750 = vmatpush1.msra.mxu0 %v640
    %751 = vmatprep.subr.mxu0 %v637
    %752 = vmatpush1.msra.mxu0 %v636
    %753 = vmatprep.subr.mxu0 %v633
    %754 = vmatpush1.msra.mxu0 %v632
    %755 = vmatprep.subr.mxu0 %v629
    %756 = vmatpush1.msra.mxu0 %v628
    %757 = vmatprep.subr.mxu0 %v625
    %758 = vmatpush1.msra.mxu0 %v624
    %759 = vmatprep.subr.mxu0 %v621
    %760 = vmatpush1.msra.mxu0 %v620
    %761 = vmatprep.subr.mxu0 %v617
    %762 = vmatpush1.msra.mxu0 %v616
    %763 = vmatprep.subr.mxu0 %v613
    %764 = vmatpush1.msra.mxu0 %v612
    %765 = vmatprep.subr.mxu0 %v609
    %766 = vmatpush1.msra.mxu0 %v608
    %767 = vmatprep.subr.mxu0 %v605
    %768 = vmatpush1.msra.mxu0 %v604
    %769 = vmatprep.subr.mxu0 %v601
    %770 = vmatpush1.msra.mxu0 %v600
    %771 = vmatprep.subr.mxu0 0.0
    %772 = vmatpush2.msra.mxu0 0.0
    %773 = vmatprep.subr.mxu0 0.0
    %774 = vmatpush2.msra.mxu0 0.0
    %775 = vmatprep.subr.mxu0 0.0
    %776 = vmatpush2.msra.mxu0 0.0
    %777 = vmatprep.subr.mxu0 0.0
    %778 = vmatpush2.msra.mxu0 0.0
    %779 = vmatprep.subr.mxu0 0.0
    %780 = vmatpush2.msra.mxu0 0.0
    %781 = vmatprep.subr.mxu0 0.0
    %782 = vmatpush2.msra.mxu0 0.0
    %783 = vmatprep.subr.mxu0 0.0
    %784 = vmatpush2.msra.mxu0 0.0
    %785 = vmatprep.subr.mxu0 0.0
    %786 = vmatpush2.msra.mxu0 0.0
    %787 = vmatprep.subr.mxu0 0.0
    %788 = vmatpush2.msra.mxu0 0.0
    %789 = vmatprep.subr.mxu0 0.0
    %790 = vmatpush2.msra.mxu0 0.0
    %791 = vmatprep.subr.mxu0 0.0
    %792 = vmatpush2.msra.mxu0 0.0
    %793 = vmatprep.subr.mxu0 0.0
    %794 = vmatpush2.msra.mxu0 0.0
    %795 = vmatprep.subr.mxu0 0.0
    %796 = vmatpush2.msra.mxu0 0.0
    %797 = vmatprep.subr.mxu0 0.0
    %798 = vmatpush2.msra.mxu0 0.0
    %799 = vmatprep.subr.mxu0 0.0
    %800 = vmatpush2.msra.mxu0 0.0
    %801 = vmatprep.subr.mxu0 0.0
    %802 = vmatpush2.msra.mxu0 0.0
    %803 = vmatprep.mubr.f32.mxu0 0.0
    %804 = vmatmul.mubr.f32.gmra.mxu0 %v376
    %v805 = vpop.f32.mrf.mxu0
    %v806 = vadd.f32 0.0, %v805
    %v807 = vpop.f32.mrf.mxu0
    %v808 = vadd.f32 0.0, %v807
    %809 = vmatprep.mubr.f32.mxu0 0.0
    %810 = vmatmul.mubr.f32.gmra.mxu0 %v377
    %v811 = vpop.f32.mrf.mxu0
    %v812 = vadd.f32 0.0, %v811
    %v813 = vpop.f32.mrf.mxu0
    %v814 = vadd.f32 0.0, %v813
    %815 = vdwg.mxu0
    %v816 = vld [vmem:[#allocation13] sm:$0xff]
    %v817 = vld [vmem:[#allocation13 + $0x8] sm:$0xff]
    %v818 = vld [vmem:[#allocation13 + $0x10] sm:$0xff]
    %v819 = vld [vmem:[#allocation13 + $0x18] sm:$0xff]
    %v820 = vld [vmem:[#allocation13 + $0x20] sm:$0xff]
    %v821 = vld [vmem:[#allocation13 + $0x28] sm:$0xff]
    %v822 = vld [vmem:[#allocation13 + $0x30] sm:$0xff]
    %v823 = vld [vmem:[#allocation13 + $0x38] sm:$0xff]
    %v824 = vld [vmem:[#allocation13 + $0x40] sm:$0xff]
    %v825 = vld [vmem:[#allocation13 + $0x48] sm:$0xff]
    %v826 = vld [vmem:[#allocation13 + $0x50] sm:$0xff]
    %v827 = vld [vmem:[#allocation13 + $0x58] sm:$0xff]
    %v828 = vld [vmem:[#allocation13 + $0x60] sm:$0xff]
    %v829 = vld [vmem:[#allocation13 + $0x68] sm:$0xff]
    %v830 = vld [vmem:[#allocation13 + $0x70] sm:$0xff]
    %v831 = vld [vmem:[#allocation13 + $0x78] sm:$0xff]
    %v832 = vld [vmem:[#allocation13 + $0x80] sm:$0xff]
    %v833 = vld [vmem:[#allocation13 + $0x88] sm:$0xff]
    %v834 = vld [vmem:[#allocation13 + $0x90] sm:$0xff]
    %v835 = vld [vmem:[#allocation13 + $0x98] sm:$0xff]
    %v836 = vld [vmem:[#allocation13 + $0xa0] sm:$0xff]
    %v837 = vld [vmem:[#allocation13 + $0xa8] sm:$0xff]
    %v838 = vld [vmem:[#allocation13 + $0xb0] sm:$0xff]
    %v839 = vld [vmem:[#allocation13 + $0xb8] sm:$0xff]
    %v840 = vld [vmem:[#allocation13 + $0xc0] sm:$0xff]
    %v841 = vld [vmem:[#allocation13 + $0xc8] sm:$0xff]
    %v842 = vld [vmem:[#allocation13 + $0xd0] sm:$0xff]
    %v843 = vld [vmem:[#allocation13 + $0xd8] sm:$0xff]
    %v844 = vld [vmem:[#allocation13 + $0xe0] sm:$0xff]
    %v845 = vld [vmem:[#allocation13 + $0xe8] sm:$0xff]
    %v846 = vld [vmem:[#allocation13 + $0xf0] sm:$0xff]
    %v847 = vld [vmem:[#allocation13 + $0xf8] sm:$0xff]
    %v848 = vld [vmem:[#allocation13 + $0x100] sm:$0xff]
    %v849 = vld [vmem:[#allocation13 + $0x108] sm:$0xff]
    %v850 = vld [vmem:[#allocation13 + $0x110] sm:$0xff]
    %v851 = vld [vmem:[#allocation13 + $0x118] sm:$0xff]
    %v852 = vld [vmem:[#allocation13 + $0x120] sm:$0xff]
    %v853 = vld [vmem:[#allocation13 + $0x128] sm:$0xff]
    %v854 = vld [vmem:[#allocation13 + $0x130] sm:$0xff]
    %v855 = vld [vmem:[#allocation13 + $0x138] sm:$0xff]
    %v856 = vld [vmem:[#allocation13 + $0x140] sm:$0xff]
    %v857 = vld [vmem:[#allocation13 + $0x148] sm:$0xff]
    %v858 = vld [vmem:[#allocation13 + $0x150] sm:$0xff]
    %v859 = vld [vmem:[#allocation13 + $0x158] sm:$0xff]
    %v860 = vld [vmem:[#allocation13 + $0x160] sm:$0xff]
    %v861 = vld [vmem:[#allocation13 + $0x168] sm:$0xff]
    %v862 = vld [vmem:[#allocation13 + $0x170] sm:$0xff]
    %v863 = vld [vmem:[#allocation13 + $0x178] sm:$0xff]
    %v864 = vld [vmem:[#allocation13 + $0x180] sm:$0xff]
    %v865 = vld [vmem:[#allocation13 + $0x188] sm:$0xff]
    %v866 = vld [vmem:[#allocation13 + $0x190] sm:$0xff]
    %v867 = vld [vmem:[#allocation13 + $0x198] sm:$0xff]
    %v868 = vld [vmem:[#allocation13 + $0x1a0] sm:$0xff]
    %v869 = vld [vmem:[#allocation13 + $0x1a8] sm:$0xff]
    %v870 = vld [vmem:[#allocation13 + $0x1b0] sm:$0xff]
    %v871 = vld [vmem:[#allocation13 + $0x1b8] sm:$0xff]
    %v872 = vld [vmem:[#allocation13 + $0x1c0] sm:$0xff]
    %v873 = vld [vmem:[#allocation13 + $0x1c8] sm:$0xff]
    %v874 = vld [vmem:[#allocation13 + $0x1d0] sm:$0xff]
    %v875 = vld [vmem:[#allocation13 + $0x1d8] sm:$0xff]
    %v876 = vld [vmem:[#allocation13 + $0x1e0] sm:$0xff]
    %v877 = vld [vmem:[#allocation13 + $0x1e8] sm:$0xff]
    %v878 = vld [vmem:[#allocation13 + $0x1f0] sm:$0xff]
    %v879 = vld [vmem:[#allocation13 + $0x1f8] sm:$0xff]
    %880 = vmatprep.subr.mxu0 %v877
    %881 = vmatpush1.msra.mxu0 %v876
    %882 = vmatprep.subr.mxu0 %v873
    %883 = vmatpush1.msra.mxu0 %v872
    %884 = vmatprep.subr.mxu0 %v869
    %885 = vmatpush1.msra.mxu0 %v868
    %886 = vmatprep.subr.mxu0 %v865
    %887 = vmatpush1.msra.mxu0 %v864
    %888 = vmatprep.subr.mxu0 %v861
    %889 = vmatpush1.msra.mxu0 %v860
    %890 = vmatprep.subr.mxu0 %v857
    %891 = vmatpush1.msra.mxu0 %v856
    %892 = vmatprep.subr.mxu0 %v853
    %893 = vmatpush1.msra.mxu0 %v852
    %894 = vmatprep.subr.mxu0 %v849
    %895 = vmatpush1.msra.mxu0 %v848
    %896 = vmatprep.subr.mxu0 %v845
    %897 = vmatpush1.msra.mxu0 %v844
    %898 = vmatprep.subr.mxu0 %v841
    %899 = vmatpush1.msra.mxu0 %v840
    %900 = vmatprep.subr.mxu0 %v837
    %901 = vmatpush1.msra.mxu0 %v836
    %902 = vmatprep.subr.mxu0 %v833
    %903 = vmatpush1.msra.mxu0 %v832
    %904 = vmatprep.subr.mxu0 %v829
    %905 = vmatpush1.msra.mxu0 %v828
    %906 = vmatprep.subr.mxu0 %v825
    %907 = vmatpush1.msra.mxu0 %v824
    %908 = vmatprep.subr.mxu0 %v821
    %909 = vmatpush1.msra.mxu0 %v820
    %910 = vmatprep.subr.mxu0 %v817
    %911 = vmatpush1.msra.mxu0 %v816
    %912 = vmatprep.subr.mxu0 0.0
    %913 = vmatpush2.msra.mxu0 0.0
    %914 = vmatprep.subr.mxu0 0.0
    %915 = vmatpush2.msra.mxu0 0.0
    %916 = vmatprep.subr.mxu0 0.0
    %917 = vmatpush2.msra.mxu0 0.0
    %918 = vmatprep.subr.mxu0 0.0
    %919 = vmatpush2.msra.mxu0 0.0
    %920 = vmatprep.subr.mxu0 0.0
    %921 = vmatpush2.msra.mxu0 0.0
    %922 = vmatprep.subr.mxu0 0.0
    %923 = vmatpush2.msra.mxu0 0.0
    %924 = vmatprep.subr.mxu0 0.0
    %925 = vmatpush2.msra.mxu0 0.0
    %926 = vmatprep.subr.mxu0 0.0
    %927 = vmatpush2.msra.mxu0 0.0
    %928 = vmatprep.subr.mxu0 0.0
    %929 = vmatpush2.msra.mxu0 0.0
    %930 = vmatprep.subr.mxu0 0.0
    %931 = vmatpush2.msra.mxu0 0.0
    %932 = vmatprep.subr.mxu0 0.0
    %933 = vmatpush2.msra.mxu0 0.0
    %934 = vmatprep.subr.mxu0 0.0
    %935 = vmatpush2.msra.mxu0 0.0
    %936 = vmatprep.subr.mxu0 0.0
    %937 = vmatpush2.msra.mxu0 0.0
    %938 = vmatprep.subr.mxu0 0.0
    %939 = vmatpush2.msra.mxu0 0.0
    %940 = vmatprep.subr.mxu0 0.0
    %941 = vmatpush2.msra.mxu0 0.0
    %942 = vmatprep.subr.mxu0 0.0
    %943 = vmatpush2.msra.mxu0 0.0
    %944 = vmatprep.mubr.f32.mxu0 0.0
    %945 = vmatmul.mubr.f32.gmra.mxu0 %v376
    %v946 = vpop.f32.mrf.mxu0
    %v947 = vadd.f32 0.0, %v946
    %v948 = vpop.f32.mrf.mxu0
    %v949 = vadd.f32 0.0, %v948
    %950 = vdwg.mxu0
    %951 = vmatprep.subr.mxu0 %v879
    %952 = vmatpush1.msra.mxu0 %v878
    %953 = vmatprep.subr.mxu0 %v875
    %954 = vmatpush1.msra.mxu0 %v874
    %955 = vmatprep.subr.mxu0 %v871
    %956 = vmatpush1.msra.mxu0 %v870
    %957 = vmatprep.subr.mxu0 %v867
    %958 = vmatpush1.msra.mxu0 %v866
    %959 = vmatprep.subr.mxu0 %v863
    %960 = vmatpush1.msra.mxu0 %v862
    %961 = vmatprep.subr.mxu0 %v859
    %962 = vmatpush1.msra.mxu0 %v858
    %963 = vmatprep.subr.mxu0 %v855
    %964 = vmatpush1.msra.mxu0 %v854
    %965 = vmatprep.subr.mxu0 %v851
    %966 = vmatpush1.msra.mxu0 %v850
    %967 = vmatprep.subr.mxu0 %v847
    %968 = vmatpush1.msra.mxu0 %v846
    %969 = vmatprep.subr.mxu0 %v843
    %970 = vmatpush1.msra.mxu0 %v842
    %971 = vmatprep.subr.mxu0 %v839
    %972 = vmatpush1.msra.mxu0 %v838
    %973 = vmatprep.subr.mxu0 %v835
    %974 = vmatpush1.msra.mxu0 %v834
    %975 = vmatprep.subr.mxu0 %v831
    %976 = vmatpush1.msra.mxu0 %v830
    %977 = vmatprep.subr.mxu0 %v827
    %978 = vmatpush1.msra.mxu0 %v826
    %979 = vmatprep.subr.mxu0 %v823
    %980 = vmatpush1.msra.mxu0 %v822
    %981 = vmatprep.subr.mxu0 %v819
    %982 = vmatpush1.msra.mxu0 %v818
    %983 = vmatprep.subr.mxu0 0.0
    %984 = vmatpush2.msra.mxu0 0.0
    %985 = vmatprep.subr.mxu0 0.0
    %986 = vmatpush2.msra.mxu0 0.0
    %987 = vmatprep.subr.mxu0 0.0
    %988 = vmatpush2.msra.mxu0 0.0
    %989 = vmatprep.subr.mxu0 0.0
    %990 = vmatpush2.msra.mxu0 0.0
    %991 = vmatprep.subr.mxu0 0.0
    %992 = vmatpush2.msra.mxu0 0.0
    %993 = vmatprep.subr.mxu0 0.0
    %994 = vmatpush2.msra.mxu0 0.0
    %995 = vmatprep.subr.mxu0 0.0
    %996 = vmatpush2.msra.mxu0 0.0
    %997 = vmatprep.subr.mxu0 0.0
    %998 = vmatpush2.msra.mxu0 0.0
    %999 = vmatprep.subr.mxu0 0.0
    %1000 = vmatpush2.msra.mxu0 0.0
    %1001 = vmatprep.subr.mxu0 0.0
    %1002 = vmatpush2.msra.mxu0 0.0
    %1003 = vmatprep.subr.mxu0 0.0
    %1004 = vmatpush2.msra.mxu0 0.0
    %1005 = vmatprep.subr.mxu0 0.0
    %1006 = vmatpush2.msra.mxu0 0.0
    %1007 = vmatprep.subr.mxu0 0.0
    %1008 = vmatpush2.msra.mxu0 0.0
    %1009 = vmatprep.subr.mxu0 0.0
    %1010 = vmatpush2.msra.mxu0 0.0
    %1011 = vmatprep.subr.mxu0 0.0
    %1012 = vmatpush2.msra.mxu0 0.0
    %1013 = vmatprep.subr.mxu0 0.0
    %1014 = vmatpush2.msra.mxu0 0.0
    %1015 = vmatprep.mubr.f32.mxu0 0.0
    %1016 = vmatmul.mubr.f32.gmra.mxu0 %v376
    %v1017 = vpop.f32.mrf.mxu0
    %v1018 = vadd.f32 0.0, %v1017
    %v1019 = vpop.f32.mrf.mxu0
    %v1020 = vadd.f32 0.0, %v1019
    %1021 = vdwg.mxu0
    %v1022 = vld [vmem:[#allocation14] sm:$0xff]
    %v1023 = vld [vmem:[#allocation14 + $0x8] sm:$0xff]
    %v1024 = vld [vmem:[#allocation14 + $0x10] sm:$0xff]
    %v1025 = vld [vmem:[#allocation14 + $0x18] sm:$0xff]
    %v1026 = vld [vmem:[#allocation14 + $0x20] sm:$0xff]
    %v1027 = vld [vmem:[#allocation14 + $0x28] sm:$0xff]
    %v1028 = vld [vmem:[#allocation14 + $0x30] sm:$0xff]
    %v1029 = vld [vmem:[#allocation14 + $0x38] sm:$0xff]
    %v1030 = vld [vmem:[#allocation14 + $0x40] sm:$0xff]
    %v1031 = vld [vmem:[#allocation14 + $0x48] sm:$0xff]
    %v1032 = vld [vmem:[#allocation14 + $0x50] sm:$0xff]
    %v1033 = vld [vmem:[#allocation14 + $0x58] sm:$0xff]
    %v1034 = vld [vmem:[#allocation14 + $0x60] sm:$0xff]
    %v1035 = vld [vmem:[#allocation14 + $0x68] sm:$0xff]
    %v1036 = vld [vmem:[#allocation14 + $0x70] sm:$0xff]
    %v1037 = vld [vmem:[#allocation14 + $0x78] sm:$0xff]
    %v1038 = vld [vmem:[#allocation14 + $0x80] sm:$0xff]
    %v1039 = vld [vmem:[#allocation14 + $0x88] sm:$0xff]
    %v1040 = vld [vmem:[#allocation14 + $0x90] sm:$0xff]
    %v1041 = vld [vmem:[#allocation14 + $0x98] sm:$0xff]
    %v1042 = vld [vmem:[#allocation14 + $0xa0] sm:$0xff]
    %v1043 = vld [vmem:[#allocation14 + $0xa8] sm:$0xff]
    %v1044 = vld [vmem:[#allocation14 + $0xb0] sm:$0xff]
    %v1045 = vld [vmem:[#allocation14 + $0xb8] sm:$0xff]
    %v1046 = vld [vmem:[#allocation14 + $0xc0] sm:$0xff]
    %v1047 = vld [vmem:[#allocation14 + $0xc8] sm:$0xff]
    %v1048 = vld [vmem:[#allocation14 + $0xd0] sm:$0xff]
    %v1049 = vld [vmem:[#allocation14 + $0xd8] sm:$0xff]
    %v1050 = vld [vmem:[#allocation14 + $0xe0] sm:$0xff]
    %v1051 = vld [vmem:[#allocation14 + $0xe8] sm:$0xff]
    %v1052 = vld [vmem:[#allocation14 + $0xf0] sm:$0xff]
    %v1053 = vld [vmem:[#allocation14 + $0xf8] sm:$0xff]
    %v1054 = vld [vmem:[#allocation14 + $0x100] sm:$0xff]
    %v1055 = vld [vmem:[#allocation14 + $0x108] sm:$0xff]
    %v1056 = vld [vmem:[#allocation14 + $0x110] sm:$0xff]
    %v1057 = vld [vmem:[#allocation14 + $0x118] sm:$0xff]
    %v1058 = vld [vmem:[#allocation14 + $0x120] sm:$0xff]
    %v1059 = vld [vmem:[#allocation14 + $0x128] sm:$0xff]
    %v1060 = vld [vmem:[#allocation14 + $0x130] sm:$0xff]
    %v1061 = vld [vmem:[#allocation14 + $0x138] sm:$0xff]
    %v1062 = vld [vmem:[#allocation14 + $0x140] sm:$0xff]
    %v1063 = vld [vmem:[#allocation14 + $0x148] sm:$0xff]
    %v1064 = vld [vmem:[#allocation14 + $0x150] sm:$0xff]
    %v1065 = vld [vmem:[#allocation14 + $0x158] sm:$0xff]
    %v1066 = vld [vmem:[#allocation14 + $0x160] sm:$0xff]
    %v1067 = vld [vmem:[#allocation14 + $0x168] sm:$0xff]
    %v1068 = vld [vmem:[#allocation14 + $0x170] sm:$0xff]
    %v1069 = vld [vmem:[#allocation14 + $0x178] sm:$0xff]
    %v1070 = vld [vmem:[#allocation14 + $0x180] sm:$0xff]
    %v1071 = vld [vmem:[#allocation14 + $0x188] sm:$0xff]
    %v1072 = vld [vmem:[#allocation14 + $0x190] sm:$0xff]
    %v1073 = vld [vmem:[#allocation14 + $0x198] sm:$0xff]
    %v1074 = vld [vmem:[#allocation14 + $0x1a0] sm:$0xff]
    %v1075 = vld [vmem:[#allocation14 + $0x1a8] sm:$0xff]
    %v1076 = vld [vmem:[#allocation14 + $0x1b0] sm:$0xff]
    %v1077 = vld [vmem:[#allocation14 + $0x1b8] sm:$0xff]
    %v1078 = vld [vmem:[#allocation14 + $0x1c0] sm:$0xff]
    %v1079 = vld [vmem:[#allocation14 + $0x1c8] sm:$0xff]
    %v1080 = vld [vmem:[#allocation14 + $0x1d0] sm:$0xff]
    %v1081 = vld [vmem:[#allocation14 + $0x1d8] sm:$0xff]
    %v1082 = vld [vmem:[#allocation14 + $0x1e0] sm:$0xff]
    %v1083 = vld [vmem:[#allocation14 + $0x1e8] sm:$0xff]
    %v1084 = vld [vmem:[#allocation14 + $0x1f0] sm:$0xff]
    %v1085 = vld [vmem:[#allocation14 + $0x1f8] sm:$0xff]
    %1086 = vmatprep.subr.mxu0 %v1083
    %1087 = vmatpush1.msra.mxu0 %v1082
    %1088 = vmatprep.subr.mxu0 %v1079
    %1089 = vmatpush1.msra.mxu0 %v1078
    %1090 = vmatprep.subr.mxu0 %v1075
    %1091 = vmatpush1.msra.mxu0 %v1074
    %1092 = vmatprep.subr.mxu0 %v1071
    %1093 = vmatpush1.msra.mxu0 %v1070
    %1094 = vmatprep.subr.mxu0 %v1067
    %1095 = vmatpush1.msra.mxu0 %v1066
    %1096 = vmatprep.subr.mxu0 %v1063
    %1097 = vmatpush1.msra.mxu0 %v1062
    %1098 = vmatprep.subr.mxu0 %v1059
    %1099 = vmatpush1.msra.mxu0 %v1058
    %1100 = vmatprep.subr.mxu0 %v1055
    %1101 = vmatpush1.msra.mxu0 %v1054
    %1102 = vmatprep.subr.mxu0 %v1051
    %1103 = vmatpush1.msra.mxu0 %v1050
    %1104 = vmatprep.subr.mxu0 %v1047
    %1105 = vmatpush1.msra.mxu0 %v1046
    %1106 = vmatprep.subr.mxu0 %v1043
    %1107 = vmatpush1.msra.mxu0 %v1042
    %1108 = vmatprep.subr.mxu0 %v1039
    %1109 = vmatpush1.msra.mxu0 %v1038
    %1110 = vmatprep.subr.mxu0 %v1035
    %1111 = vmatpush1.msra.mxu0 %v1034
    %1112 = vmatprep.subr.mxu0 %v1031
    %1113 = vmatpush1.msra.mxu0 %v1030
    %1114 = vmatprep.subr.mxu0 %v1027
    %1115 = vmatpush1.msra.mxu0 %v1026
    %1116 = vmatprep.subr.mxu0 %v1023
    %1117 = vmatpush1.msra.mxu0 %v1022
    %1118 = vmatprep.subr.mxu0 0.0
    %1119 = vmatpush2.msra.mxu0 0.0
    %1120 = vmatprep.subr.mxu0 0.0
    %1121 = vmatpush2.msra.mxu0 0.0
    %1122 = vmatprep.subr.mxu0 0.0
    %1123 = vmatpush2.msra.mxu0 0.0
    %1124 = vmatprep.subr.mxu0 0.0
    %1125 = vmatpush2.msra.mxu0 0.0
    %1126 = vmatprep.subr.mxu0 0.0
    %1127 = vmatpush2.msra.mxu0 0.0
    %1128 = vmatprep.subr.mxu0 0.0
    %1129 = vmatpush2.msra.mxu0 0.0
    %1130 = vmatprep.subr.mxu0 0.0
    %1131 = vmatpush2.msra.mxu0 0.0
    %1132 = vmatprep.subr.mxu0 0.0
    %1133 = vmatpush2.msra.mxu0 0.0
    %1134 = vmatprep.subr.mxu0 0.0
    %1135 = vmatpush2.msra.mxu0 0.0
    %1136 = vmatprep.subr.mxu0 0.0
    %1137 = vmatpush2.msra.mxu0 0.0
    %1138 = vmatprep.subr.mxu0 0.0
    %1139 = vmatpush2.msra.mxu0 0.0
    %1140 = vmatprep.subr.mxu0 0.0
    %1141 = vmatpush2.msra.mxu0 0.0
    %1142 = vmatprep.subr.mxu0 0.0
    %1143 = vmatpush2.msra.mxu0 0.0
    %1144 = vmatprep.subr.mxu0 0.0
    %1145 = vmatpush2.msra.mxu0 0.0
    %1146 = vmatprep.subr.mxu0 0.0
    %1147 = vmatpush2.msra.mxu0 0.0
    %1148 = vmatprep.subr.mxu0 0.0
    %1149 = vmatpush2.msra.mxu0 0.0
    %1150 = vmatprep.mubr.f32.mxu0 0.0
    %1151 = vmatmul.mubr.f32.gmra.mxu0 %v376
    %v1152 = vpop.f32.mrf.mxu0
    %v1153 = vadd.f32 0.0, %v1152
    %v1154 = vpop.f32.mrf.mxu0
    %v1155 = vadd.f32 0.0, %v1154
    %1156 = vmatprep.mubr.f32.mxu0 0.0
    %1157 = vmatmul.mubr.f32.gmra.mxu0 %v493
    %v1158 = vpop.f32.mrf.mxu0
    %v1159 = vadd.f32 0.0, %v1158
    %v1160 = vpop.f32.mrf.mxu0
    %v1161 = vadd.f32 0.0, %v1160
    %1162 = vmatprep.mubr.f32.mxu0 0.0
    %1163 = vmatmul.mubr.f32.gmra.mxu0 %v597
    %v1164 = vpop.f32.mrf.mxu0
    %v1165 = vadd.f32 0.0, %v1164
    %v1166 = vpop.f32.mrf.mxu0
    %v1167 = vadd.f32 0.0, %v1166
    %1168 = vdwg.mxu0
    %1169 = vmatprep.subr.mxu0 %v1085
    %1170 = vmatpush1.msra.mxu0 %v1084
    %1171 = vmatprep.subr.mxu0 %v1081
    %1172 = vmatpush1.msra.mxu0 %v1080
    %1173 = vmatprep.subr.mxu0 %v1077
    %1174 = vmatpush1.msra.mxu0 %v1076
    %1175 = vmatprep.subr.mxu0 %v1073
    %1176 = vmatpush1.msra.mxu0 %v1072
    %1177 = vmatprep.subr.mxu0 %v1069
    %1178 = vmatpush1.msra.mxu0 %v1068
    %1179 = vmatprep.subr.mxu0 %v1065
    %1180 = vmatpush1.msra.mxu0 %v1064
    %1181 = vmatprep.subr.mxu0 %v1061
    %1182 = vmatpush1.msra.mxu0 %v1060
    %1183 = vmatprep.subr.mxu0 %v1057
    %1184 = vmatpush1.msra.mxu0 %v1056
    %1185 = vmatprep.subr.mxu0 %v1053
    %1186 = vmatpush1.msra.mxu0 %v1052
    %1187 = vmatprep.subr.mxu0 %v1049
    %1188 = vmatpush1.msra.mxu0 %v1048
    %1189 = vmatprep.subr.mxu0 %v1045
    %1190 = vmatpush1.msra.mxu0 %v1044
    %1191 = vmatprep.subr.mxu0 %v1041
    %1192 = vmatpush1.msra.mxu0 %v1040
    %1193 = vmatprep.subr.mxu0 %v1037
    %1194 = vmatpush1.msra.mxu0 %v1036
    %1195 = vmatprep.subr.mxu0 %v1033
    %1196 = vmatpush1.msra.mxu0 %v1032
    %1197 = vmatprep.subr.mxu0 %v1029
    %1198 = vmatpush1.msra.mxu0 %v1028
    %1199 = vmatprep.subr.mxu0 %v1025
    %1200 = vmatpush1.msra.mxu0 %v1024
    %1201 = vmatprep.subr.mxu0 0.0
    %1202 = vmatpush2.msra.mxu0 0.0
    %1203 = vmatprep.subr.mxu0 0.0
    %1204 = vmatpush2.msra.mxu0 0.0
    %1205 = vmatprep.subr.mxu0 0.0
    %1206 = vmatpush2.msra.mxu0 0.0
    %1207 = vmatprep.subr.mxu0 0.0
    %1208 = vmatpush2.msra.mxu0 0.0
    %1209 = vmatprep.subr.mxu0 0.0
    %1210 = vmatpush2.msra.mxu0 0.0
    %1211 = vmatprep.subr.mxu0 0.0
    %1212 = vmatpush2.msra.mxu0 0.0
    %1213 = vmatprep.subr.mxu0 0.0
    %1214 = vmatpush2.msra.mxu0 0.0
    %1215 = vmatprep.subr.mxu0 0.0
    %1216 = vmatpush2.msra.mxu0 0.0
    %1217 = vmatprep.subr.mxu0 0.0
    %1218 = vmatpush2.msra.mxu0 0.0
    %1219 = vmatprep.subr.mxu0 0.0
    %1220 = vmatpush2.msra.mxu0 0.0
    %1221 = vmatprep.subr.mxu0 0.0
    %1222 = vmatpush2.msra.mxu0 0.0
    %1223 = vmatprep.subr.mxu0 0.0
    %1224 = vmatpush2.msra.mxu0 0.0
    %1225 = vmatprep.subr.mxu0 0.0
    %1226 = vmatpush2.msra.mxu0 0.0
    %1227 = vmatprep.subr.mxu0 0.0
    %1228 = vmatpush2.msra.mxu0 0.0
    %1229 = vmatprep.subr.mxu0 0.0
    %1230 = vmatpush2.msra.mxu0 0.0
    %1231 = vmatprep.subr.mxu0 0.0
    %1232 = vmatpush2.msra.mxu0 0.0
    %1233 = vmatprep.mubr.f32.mxu0 0.0
    %1234 = vmatmul.mubr.f32.gmra.mxu0 %v376
    %v1235 = vpop.f32.mrf.mxu0
    %v1236 = vadd.f32 0.0, %v1235
    %v1237 = vpop.f32.mrf.mxu0
    %v1238 = vadd.f32 0.0, %v1237
    %1239 = vmatprep.mubr.f32.mxu0 0.0
    %1240 = vmatmul.mubr.f32.gmra.mxu0 %v493
    %v1241 = vpop.f32.mrf.mxu0
    %v1242 = vadd.f32 0.0, %v1241
    %v1243 = vpop.f32.mrf.mxu0
    %v1244 = vadd.f32 0.0, %v1243
    %1245 = vmatprep.mubr.f32.mxu0 0.0
    %1246 = vmatmul.mubr.f32.gmra.mxu0 %v597
    %v1247 = vpop.f32.mrf.mxu0
    %v1248 = vadd.f32 0.0, %v1247
    %v1249 = vpop.f32.mrf.mxu0
    %v1250 = vadd.f32 0.0, %v1249
    %1251 = vdwg.mxu0
    %v1252 = vmul.f32 %v947, %v1153
    %v1253 = vmul.f32 %v949, %v1155
    %v1254 = vmul.f32 %v1018, %v1236
    %v1255 = vmul.f32 %v1020, %v1238
    %v1256 = vmul.f32 %v729, %v735
    %v1257 = vmul.f32 %v731, %v737
    %v1258 = vmul.f32 %v806, %v812
    %v1259 = vmul.f32 %v808, %v814
    %v1260 = vmul.f32 %v1252, %v188
    %v1261 = vmul.f32 %v1253, %v189
    %v1262 = vmul.f32 %v1254, %v190
    %v1263 = vmul.f32 %v1255, %v191
    %v1264 = vmul.f32 %v1256, %v1159
    %v1265 = vmul.f32 %v1257, %v1161
    %v1266 = vmul.f32 %v1258, %v1242
    %v1267 = vmul.f32 %v1259, %v1244
    %v1268 = vadd.f32 %v1260, %v1264
    %v1269 = vadd.f32 %v1261, %v1265
    %v1270 = vadd.f32 %v1262, %v1266
    %v1271 = vadd.f32 %v1263, %v1267
    %v1272 = vmul.f32 %v1252, %v192
    %v1273 = vmul.f32 %v1253, %v193
    %v1274 = vmul.f32 %v1254, %v194
    %v1275 = vmul.f32 %v1255, %v195
    %v1276 = vmul.f32 %v1256, %v1165
    %v1277 = vmul.f32 %v1257, %v1167
    %v1278 = vmul.f32 %v1258, %v1248
    %v1279 = vmul.f32 %v1259, %v1250
    %v1280 = vadd.f32 %v1272, %v1276
    %v1281 = vadd.f32 %v1273, %v1277
    %v1282 = vadd.f32 %v1274, %v1278
    %v1283 = vadd.f32 %v1275, %v1279
    %v1284 = vmul.f32 %v1268, %v1268
    %v1285 = vmul.f32 %v1269, %v1269
    %v1286 = vmul.f32 %v1270, %v1270
    %v1287 = vmul.f32 %v1271, %v1271
    %v1288 = vmul.f32 %v1280, %v1280
    %v1289 = vmul.f32 %v1281, %v1281
    %v1290 = vmul.f32 %v1282, %v1282
    %v1291 = vmul.f32 %v1283, %v1283
    %v1292 = vadd.f32 %v1284, %v1288
    %v1293 = vadd.f32 %v1285, %v1289
    %v1294 = vadd.f32 %v1286, %v1290
    %v1295 = vadd.f32 %v1287, %v1291
    %v1296 = vrsqrt.pop %v1292
    %v1297 = vmul.f32 %v1292, %v1296
    %vm1298 = vcmp.eq.f32.partialorder %v1292, inf
    %v1299 = vsel %vm1298, %v1292, %v1297
    %vm1300 = vcmp.eq.f32.partialorder %v1292, 0.0
    %v1301 = vand.u32 %v1292, 2147483648
    %v1302 = vsel %vm1300, %v1301, %v1299
    %v1303 = vrsqrt.pop %v1293
    %v1304 = vmul.f32 %v1293, %v1303
    %vm1305 = vcmp.eq.f32.partialorder %v1293, inf
    %v1306 = vsel %vm1305, %v1293, %v1304
    %vm1307 = vcmp.eq.f32.partialorder %v1293, 0.0
    %v1308 = vand.u32 %v1293, 2147483648
    %v1309 = vsel %vm1307, %v1308, %v1306
    %v1310 = vrsqrt.pop %v1294
    %v1311 = vmul.f32 %v1294, %v1310
    %vm1312 = vcmp.eq.f32.partialorder %v1294, inf
    %v1313 = vsel %vm1312, %v1294, %v1311
    %vm1314 = vcmp.eq.f32.partialorder %v1294, 0.0
    %v1315 = vand.u32 %v1294, 2147483648
    %v1316 = vsel %vm1314, %v1315, %v1313
    %v1317 = vrsqrt.pop %v1295
    %v1318 = vmul.f32 %v1295, %v1317
    %vm1319 = vcmp.eq.f32.partialorder %v1295, inf
    %v1320 = vsel %vm1319, %v1295, %v1318
    %vm1321 = vcmp.eq.f32.partialorder %v1295, 0.0
    %v1322 = vand.u32 %v1295, 2147483648
    %v1323 = vsel %vm1321, %v1322, %v1320
    %v1324 = vld [vmem:[#allocation16] sm:$0xff]
    %v1325 = vld [vmem:[#allocation16 + $0x8] sm:$0xff]
    %v1326 = vld [vmem:[#allocation16 + $0x10] sm:$0xff]
    %v1327 = vld [vmem:[#allocation16 + $0x18] sm:$0xff]
    %v1328 = vld [vmem:[#allocation16 + $0x20] sm:$0xff]
    %v1329 = vld [vmem:[#allocation16 + $0x28] sm:$0xff]
    %v1330 = vld [vmem:[#allocation16 + $0x30] sm:$0xff]
    %v1331 = vld [vmem:[#allocation16 + $0x38] sm:$0xff]
    %v1332 = vld [vmem:[#allocation16 + $0x40] sm:$0xff]
    %v1333 = vld [vmem:[#allocation16 + $0x48] sm:$0xff]
    %v1334 = vld [vmem:[#allocation16 + $0x50] sm:$0xff]
    %v1335 = vld [vmem:[#allocation16 + $0x58] sm:$0xff]
    %v1336 = vld [vmem:[#allocation16 + $0x60] sm:$0xff]
    %v1337 = vld [vmem:[#allocation16 + $0x68] sm:$0xff]
    %v1338 = vld [vmem:[#allocation16 + $0x70] sm:$0xff]
    %v1339 = vld [vmem:[#allocation16 + $0x78] sm:$0xff]
    %v1340 = vld [vmem:[#allocation16 + $0x80] sm:$0xff]
    %v1341 = vld [vmem:[#allocation16 + $0x88] sm:$0xff]
    %v1342 = vld [vmem:[#allocation16 + $0x90] sm:$0xff]
    %v1343 = vld [vmem:[#allocation16 + $0x98] sm:$0xff]
    %v1344 = vld [vmem:[#allocation16 + $0xa0] sm:$0xff]
    %v1345 = vld [vmem:[#allocation16 + $0xa8] sm:$0xff]
    %v1346 = vld [vmem:[#allocation16 + $0xb0] sm:$0xff]
    %v1347 = vld [vmem:[#allocation16 + $0xb8] sm:$0xff]
    %v1348 = vld [vmem:[#allocation16 + $0xc0] sm:$0xff]
    %v1349 = vld [vmem:[#allocation16 + $0xc8] sm:$0xff]
    %v1350 = vld [vmem:[#allocation16 + $0xd0] sm:$0xff]
    %v1351 = vld [vmem:[#allocation16 + $0xd8] sm:$0xff]
    %v1352 = vld [vmem:[#allocation16 + $0xe0] sm:$0xff]
    %v1353 = vld [vmem:[#allocation16 + $0xe8] sm:$0xff]
    %v1354 = vld [vmem:[#allocation16 + $0xf0] sm:$0xff]
    %v1355 = vld [vmem:[#allocation16 + $0xf8] sm:$0xff]
    %v1356 = vld [vmem:[#allocation16 + $0x100] sm:$0xff]
    %v1357 = vld [vmem:[#allocation16 + $0x108] sm:$0xff]
    %v1358 = vld [vmem:[#allocation16 + $0x110] sm:$0xff]
    %v1359 = vld [vmem:[#allocation16 + $0x118] sm:$0xff]
    %v1360 = vld [vmem:[#allocation16 + $0x120] sm:$0xff]
    %v1361 = vld [vmem:[#allocation16 + $0x128] sm:$0xff]
    %v1362 = vld [vmem:[#allocation16 + $0x130] sm:$0xff]
    %v1363 = vld [vmem:[#allocation16 + $0x138] sm:$0xff]
    %v1364 = vld [vmem:[#allocation16 + $0x140] sm:$0xff]
    %v1365 = vld [vmem:[#allocation16 + $0x148] sm:$0xff]
    %v1366 = vld [vmem:[#allocation16 + $0x150] sm:$0xff]
    %v1367 = vld [vmem:[#allocation16 + $0x158] sm:$0xff]
    %v1368 = vld [vmem:[#allocation16 + $0x160] sm:$0xff]
    %v1369 = vld [vmem:[#allocation16 + $0x168] sm:$0xff]
    %v1370 = vld [vmem:[#allocation16 + $0x170] sm:$0xff]
    %v1371 = vld [vmem:[#allocation16 + $0x178] sm:$0xff]
    %v1372 = vld [vmem:[#allocation16 + $0x180] sm:$0xff]
    %v1373 = vld [vmem:[#allocation16 + $0x188] sm:$0xff]
    %v1374 = vld [vmem:[#allocation16 + $0x190] sm:$0xff]
    %v1375 = vld [vmem:[#allocation16 + $0x198] sm:$0xff]
    %v1376 = vld [vmem:[#allocation16 + $0x1a0] sm:$0xff]
    %v1377 = vld [vmem:[#allocation16 + $0x1a8] sm:$0xff]
    %v1378 = vld [vmem:[#allocation16 + $0x1b0] sm:$0xff]
    %v1379 = vld [vmem:[#allocation16 + $0x1b8] sm:$0xff]
    %v1380 = vld [vmem:[#allocation16 + $0x1c0] sm:$0xff]
    %v1381 = vld [vmem:[#allocation16 + $0x1c8] sm:$0xff]
    %v1382 = vld [vmem:[#allocation16 + $0x1d0] sm:$0xff]
    %v1383 = vld [vmem:[#allocation16 + $0x1d8] sm:$0xff]
    %v1384 = vld [vmem:[#allocation16 + $0x1e0] sm:$0xff]
    %v1385 = vld [vmem:[#allocation16 + $0x1e8] sm:$0xff]
    %v1386 = vld [vmem:[#allocation16 + $0x1f0] sm:$0xff]
    %v1387 = vld [vmem:[#allocation16 + $0x1f8] sm:$0xff]
    %v1388 = vld [vmem:[%s12] sm:$0x1]
    %v1390 = vlaneseq
    %v1391 = vshrl.u32 %v1390, 7
    %v1392 = vsub.s32 0, %v1391
    %v1393 = vrot.slane %v1388, %v1392
    %1395 = vmatprep.subr.mxu0 0.0
    %1396 = vmatpush1.msra.mxu0 %v1339
    %1397 = vmatprep.subr.mxu0 0.0
    %1398 = vmatpush1.msra.mxu0 %v1338
    %1399 = vmatprep.subr.mxu0 0.0
    %1400 = vmatpush1.msra.mxu0 %v1337
    %1401 = vmatprep.subr.mxu0 0.0
    %1402 = vmatpush1.msra.mxu0 %v1336
    %1403 = vmatprep.subr.mxu0 0.0
    %1404 = vmatpush1.msra.mxu0 %v1335
    %1405 = vmatprep.subr.mxu0 0.0
    %1406 = vmatpush1.msra.mxu0 %v1334
    %1407 = vmatprep.subr.mxu0 0.0
    %1408 = vmatpush1.msra.mxu0 %v1333
    %1409 = vmatprep.subr.mxu0 0.0
    %1410 = vmatpush1.msra.mxu0 %v1332
    %1411 = vmatprep.subr.mxu0 0.0
    %1412 = vmatpush1.msra.mxu0 %v1331
    %1413 = vmatprep.subr.mxu0 0.0
    %1414 = vmatpush1.msra.mxu0 %v1330
    %1415 = vmatprep.subr.mxu0 0.0
    %1416 = vmatpush1.msra.mxu0 %v1329
    %1417 = vmatprep.subr.mxu0 0.0
    %1418 = vmatpush1.msra.mxu0 %v1328
    %1419 = vmatprep.subr.mxu0 0.0
    %1420 = vmatpush1.msra.mxu0 %v1327
    %1421 = vmatprep.subr.mxu0 0.0
    %1422 = vmatpush1.msra.mxu0 %v1326
    %1423 = vmatprep.subr.mxu0 0.0
    %1424 = vmatpush1.msra.mxu0 %v1325
    %1425 = vmatprep.subr.mxu0 0.0
    %1426 = vmatpush1.msra.mxu0 %v1324
    %1427 = vmatprep.subr.mxu0 0.0
    %1428 = vmatpush2.msra.mxu0 %v1355
    %1429 = vmatprep.subr.mxu0 0.0
    %1430 = vmatpush2.msra.mxu0 %v1354
    %1431 = vmatprep.subr.mxu0 0.0
    %1432 = vmatpush2.msra.mxu0 %v1353
    %1433 = vmatprep.subr.mxu0 0.0
    %1434 = vmatpush2.msra.mxu0 %v1352
    %1435 = vmatprep.subr.mxu0 0.0
    %1436 = vmatpush2.msra.mxu0 %v1351
    %1437 = vmatprep.subr.mxu0 0.0
    %1438 = vmatpush2.msra.mxu0 %v1350
    %1439 = vmatprep.subr.mxu0 0.0
    %1440 = vmatpush2.msra.mxu0 %v1349
    %1441 = vmatprep.subr.mxu0 0.0
    %1442 = vmatpush2.msra.mxu0 %v1348
    %1443 = vmatprep.subr.mxu0 0.0
    %1444 = vmatpush2.msra.mxu0 %v1347
    %1445 = vmatprep.subr.mxu0 0.0
    %1446 = vmatpush2.msra.mxu0 %v1346
    %1447 = vmatprep.subr.mxu0 0.0
    %1448 = vmatpush2.msra.mxu0 %v1345
    %1449 = vmatprep.subr.mxu0 0.0
    %1450 = vmatpush2.msra.mxu0 %v1344
    %1451 = vmatprep.subr.mxu0 0.0
    %1452 = vmatpush2.msra.mxu0 %v1343
    %1453 = vmatprep.subr.mxu0 0.0
    %1454 = vmatpush2.msra.mxu0 %v1342
    %1455 = vmatprep.subr.mxu0 0.0
    %1456 = vmatpush2.msra.mxu0 %v1341
    %1457 = vmatprep.subr.mxu0 0.0
    %1458 = vmatpush2.msra.mxu0 %v1340
    %1459 = vmatprep.mubr.f32.mxu0 %v1309
    %1460 = vmatmul.mubr.f32.gmra.mxu0 %v1302
    %v1461 = vpop.f32.mrf.mxu0
    %v1462 = vadd.f32 %v1393, %v1461
    %v1463 = vpop.f32.mrf.mxu0
    %1464 = vdwg.mxu0
    %1465 = vmatprep.subr.mxu0 0.0
    %1466 = vmatpush1.msra.mxu0 %v1371
    %1467 = vmatprep.subr.mxu0 0.0
    %1468 = vmatpush1.msra.mxu0 %v1370
    %1469 = vmatprep.subr.mxu0 0.0
    %1470 = vmatpush1.msra.mxu0 %v1369
    %1471 = vmatprep.subr.mxu0 0.0
    %1472 = vmatpush1.msra.mxu0 %v1368
    %1473 = vmatprep.subr.mxu0 0.0
    %1474 = vmatpush1.msra.mxu0 %v1367
    %1475 = vmatprep.subr.mxu0 0.0
    %1476 = vmatpush1.msra.mxu0 %v1366
    %1477 = vmatprep.subr.mxu0 0.0
    %1478 = vmatpush1.msra.mxu0 %v1365
    %1479 = vmatprep.subr.mxu0 0.0
    %1480 = vmatpush1.msra.mxu0 %v1364
    %1481 = vmatprep.subr.mxu0 0.0
    %1482 = vmatpush1.msra.mxu0 %v1363
    %1483 = vmatprep.subr.mxu0 0.0
    %1484 = vmatpush1.msra.mxu0 %v1362
    %1485 = vmatprep.subr.mxu0 0.0
    %1486 = vmatpush1.msra.mxu0 %v1361
    %1487 = vmatprep.subr.mxu0 0.0
    %1488 = vmatpush1.msra.mxu0 %v1360
    %1489 = vmatprep.subr.mxu0 0.0
    %1490 = vmatpush1.msra.mxu0 %v1359
    %1491 = vmatprep.subr.mxu0 0.0
    %1492 = vmatpush1.msra.mxu0 %v1358
    %1493 = vmatprep.subr.mxu0 0.0
    %1494 = vmatpush1.msra.mxu0 %v1357
    %1495 = vmatprep.subr.mxu0 0.0
    %1496 = vmatpush1.msra.mxu0 %v1356
    %1497 = vmatprep.subr.mxu0 0.0
    %1498 = vmatpush2.msra.mxu0 %v1387
    %1499 = vmatprep.subr.mxu0 0.0
    %1500 = vmatpush2.msra.mxu0 %v1386
    %1501 = vmatprep.subr.mxu0 0.0
    %1502 = vmatpush2.msra.mxu0 %v1385
    %1503 = vmatprep.subr.mxu0 0.0
    %1504 = vmatpush2.msra.mxu0 %v1384
    %1505 = vmatprep.subr.mxu0 0.0
    %1506 = vmatpush2.msra.mxu0 %v1383
    %1507 = vmatprep.subr.mxu0 0.0
    %1508 = vmatpush2.msra.mxu0 %v1382
    %1509 = vmatprep.subr.mxu0 0.0
    %1510 = vmatpush2.msra.mxu0 %v1381
    %1511 = vmatprep.subr.mxu0 0.0
    %1512 = vmatpush2.msra.mxu0 %v1380
    %1513 = vmatprep.subr.mxu0 0.0
    %1514 = vmatpush2.msra.mxu0 %v1379
    %1515 = vmatprep.subr.mxu0 0.0
    %1516 = vmatpush2.msra.mxu0 %v1378
    %1517 = vmatprep.subr.mxu0 0.0
    %1518 = vmatpush2.msra.mxu0 %v1377
    %1519 = vmatprep.subr.mxu0 0.0
    %1520 = vmatpush2.msra.mxu0 %v1376
    %1521 = vmatprep.subr.mxu0 0.0
    %1522 = vmatpush2.msra.mxu0 %v1375
    %1523 = vmatprep.subr.mxu0 0.0
    %1524 = vmatpush2.msra.mxu0 %v1374
    %1525 = vmatprep.subr.mxu0 0.0
    %1526 = vmatpush2.msra.mxu0 %v1373
    %1527 = vmatprep.subr.mxu0 0.0
    %1528 = vmatpush2.msra.mxu0 %v1372
    %1529 = vmatprep.mubr.f32.mxu0 %v1323
    %1530 = vmatmul.mubr.f32.gmra.mxu0 %v1316
    %v1531 = vpop.f32.mrf.mxu0
    %v1532 = vadd.f32 %v1462, %v1531
    %v1533 = vpop.f32.mrf.mxu0
    %1534 = vdwg.mxu0
    %v1535 = vtanh.pop %v1532
    %v1536 = vmul.f32 %v376, %v1535
    %v1537 = vld [vmem:[#allocation17] sm:$0xff]
    %v1538 = vld [vmem:[#allocation17 + $0x8] sm:$0xff]
    %v1539 = vld [vmem:[#allocation17 + $0x10] sm:$0xff]
    %v1540 = vld [vmem:[#allocation17 + $0x18] sm:$0xff]
    %v1541 = vld [vmem:[#allocation17 + $0x20] sm:$0xff]
    %v1542 = vld [vmem:[#allocation17 + $0x28] sm:$0xff]
    %v1543 = vld [vmem:[#allocation17 + $0x30] sm:$0xff]
    %v1544 = vld [vmem:[#allocation17 + $0x38] sm:$0xff]
    %v1545 = vld [vmem:[#allocation17 + $0x40] sm:$0xff]
    %v1546 = vld [vmem:[#allocation17 + $0x48] sm:$0xff]
    %v1547 = vld [vmem:[#allocation17 + $0x50] sm:$0xff]
    %v1548 = vld [vmem:[#allocation17 + $0x58] sm:$0xff]
    %v1549 = vld [vmem:[#allocation17 + $0x60] sm:$0xff]
    %v1550 = vld [vmem:[#allocation17 + $0x68] sm:$0xff]
    %v1551 = vld [vmem:[#allocation17 + $0x70] sm:$0xff]
    %v1552 = vld [vmem:[#allocation17 + $0x78] sm:$0xff]
    %v1553 = vld [vmem:[%s15] sm:$0x1]
    %v1555 = vlaneseq
    %v1556 = vshrl.u32 %v1555, 7
    %v1557 = vsub.s32 0, %v1556
    %v1558 = vrot.slane %v1553, %v1557
    %1560 = vmatprep.subr.mxu0 0.0
    %1561 = vmatpush1.msra.mxu0 %v1552
    %1562 = vmatprep.subr.mxu0 0.0
    %1563 = vmatpush1.msra.mxu0 %v1551
    %1564 = vmatprep.subr.mxu0 0.0
    %1565 = vmatpush1.msra.mxu0 %v1550
    %1566 = vmatprep.subr.mxu0 0.0
    %1567 = vmatpush1.msra.mxu0 %v1549
    %1568 = vmatprep.subr.mxu0 0.0
    %1569 = vmatpush1.msra.mxu0 %v1548
    %1570 = vmatprep.subr.mxu0 0.0
    %1571 = vmatpush1.msra.mxu0 %v1547
    %1572 = vmatprep.subr.mxu0 0.0
    %1573 = vmatpush1.msra.mxu0 %v1546
    %1574 = vmatprep.subr.mxu0 0.0
    %1575 = vmatpush1.msra.mxu0 %v1545
    %1576 = vmatprep.subr.mxu0 0.0
    %1577 = vmatpush1.msra.mxu0 %v1544
    %1578 = vmatprep.subr.mxu0 0.0
    %1579 = vmatpush1.msra.mxu0 %v1543
    %1580 = vmatprep.subr.mxu0 0.0
    %1581 = vmatpush1.msra.mxu0 %v1542
    %1582 = vmatprep.subr.mxu0 0.0
    %1583 = vmatpush1.msra.mxu0 %v1541
    %1584 = vmatprep.subr.mxu0 0.0
    %1585 = vmatpush1.msra.mxu0 %v1540
    %1586 = vmatprep.subr.mxu0 0.0
    %1587 = vmatpush1.msra.mxu0 %v1539
    %1588 = vmatprep.subr.mxu0 0.0
    %1589 = vmatpush1.msra.mxu0 %v1538
    %1590 = vmatprep.subr.mxu0 0.0
    %1591 = vmatpush1.msra.mxu0 %v1537
    %1592 = vmatprep.subr.mxu0 0.0
    %1593 = vmatpush2.msra.mxu0 0.0
    %1594 = vmatprep.subr.mxu0 0.0
    %1595 = vmatpush2.msra.mxu0 0.0
    %1596 = vmatprep.subr.mxu0 0.0
    %1597 = vmatpush2.msra.mxu0 0.0
    %1598 = vmatprep.subr.mxu0 0.0
    %1599 = vmatpush2.msra.mxu0 0.0
    %1600 = vmatprep.subr.mxu0 0.0
    %1601 = vmatpush2.msra.mxu0 0.0
    %1602 = vmatprep.subr.mxu0 0.0
    %1603 = vmatpush2.msra.mxu0 0.0
    %1604 = vmatprep.subr.mxu0 0.0
    %1605 = vmatpush2.msra.mxu0 0.0
    %1606 = vmatprep.subr.mxu0 0.0
    %1607 = vmatpush2.msra.mxu0 0.0
    %1608 = vmatprep.subr.mxu0 0.0
    %1609 = vmatpush2.msra.mxu0 0.0
    %1610 = vmatprep.subr.mxu0 0.0
    %1611 = vmatpush2.msra.mxu0 0.0
    %1612 = vmatprep.subr.mxu0 0.0
    %1613 = vmatpush2.msra.mxu0 0.0
    %1614 = vmatprep.subr.mxu0 0.0
    %1615 = vmatpush2.msra.mxu0 0.0
    %1616 = vmatprep.subr.mxu0 0.0
    %1617 = vmatpush2.msra.mxu0 0.0
    %1618 = vmatprep.subr.mxu0 0.0
    %1619 = vmatpush2.msra.mxu0 0.0
    %1620 = vmatprep.subr.mxu0 0.0
    %1621 = vmatpush2.msra.mxu0 0.0
    %1622 = vmatprep.subr.mxu0 0.0
    %1623 = vmatpush2.msra.mxu0 0.0
    %1624 = vmatprep.mubr.f32.mxu0 0.0
    %1625 = vmatmul.mubr.f32.gmra.mxu0 %v1536
    %v1626 = vpop.f32.mrf.mxu0
    %v1627 = vadd.f32 %v1558, %v1626
    %v1628 = vpop.f32.mrf.mxu0
    %1629 = vdwg.mxu0
    %1630 = vst [vmem:[#allocation19] sm:$0xff] %v1627
    %1631 = vst [vmem:[#allocation20] sm:$0xff] %v1268
    %1632 = vst [vmem:[#allocation20 + $0x8] sm:$0xff] %v1269
    %1633 = vst [vmem:[#allocation20 + $0x10] sm:$0xff] %v1270
    %1634 = vst [vmem:[#allocation20 + $0x18] sm:$0xff] %v1271
    %1635 = vst [vmem:[#allocation22] sm:$0xff] %v1280
    %1636 = vst [vmem:[#allocation22 + $0x8] sm:$0xff] %v1281
    %1637 = vst [vmem:[#allocation22 + $0x10] sm:$0xff] %v1282
    %1638 = vst [vmem:[#allocation22 + $0x18] sm:$0xff] %v1283
    // Predicated region
    $region106: #{tpu_custom_call.1} parent=1 // pred_check
      _
    $region107: #{tpu_custom_call.1} parent=1 // pred_check_branch
      %1640 = sbr.rel (0) target = $region109
    $region108: #{tpu_custom_call.1} parent=1 // pred_region
      %s1642 = ssub.s32 128, 128
      %1643 = vsyncadd [#allocation4], %s1642
      %s1645 = sshll.u32 [#allocation19], 4
      %s1646 = int_to_ptr.vmem [resolvable:$true] %s1645
      %1648 = dma.vmem_to_hbm [thread:$0]  %s1646, 128, %s16, [#allocation4]
    $region109: #{tpu_custom_call.1} parent=1 // pred_fallthru
      _
    // Predicated region
    $region110: #{tpu_custom_call.1} parent=1 // pred_check
      _
    $region111: #{tpu_custom_call.1} parent=1 // pred_check_branch
      %1650 = sbr.rel (0) target = $region113
    $region112: #{tpu_custom_call.1} parent=1 // pred_region
      %s1652 = ssub.s32 512, 512
      %1653 = vsyncadd [#allocation21], %s1652
      %s1655 = sshll.u32 [#allocation20], 4
      %s1656 = int_to_ptr.vmem [resolvable:$true] %s1655
      %1658 = dma.vmem_to_hbm [thread:$0]  %s1656, 512, %s17, [#allocation21]
    $region113: #{tpu_custom_call.1} parent=1 // pred_fallthru
      _
    // Predicated region
    $region114: #{tpu_custom_call.1} parent=1 // pred_check
      _
    $region115: #{tpu_custom_call.1} parent=1 // pred_check_branch
      %1660 = sbr.rel (0) target = $region117
    $region116: #{tpu_custom_call.1} parent=1 // pred_region
      %s1662 = ssub.s32 512, 512
      %1663 = vsyncadd [#allocation21], %s1662
      %s1665 = sshll.u32 [#allocation22], 4
      %s1666 = int_to_ptr.vmem [resolvable:$true] %s1665
      %1668 = dma.vmem_to_hbm [thread:$0]  %s1666, 512, %s18, [#allocation21]
    $region117: #{tpu_custom_call.1} parent=1 // pred_fallthru
      _
    // Predicated region
    $region118: #{tpu_custom_call.1} parent=1 // pred_check
      _
    $region119: #{tpu_custom_call.1} parent=1 // pred_check_branch
      %1670 = sbr.rel (0) target = $region121
    $region120: #{tpu_custom_call.1} parent=1 // pred_region
      %1671 = dma.done [#allocation4], 128
    $region121: #{tpu_custom_call.1} parent=1 // pred_fallthru
      _
    // Predicated region
    $region122: #{tpu_custom_call.1} parent=1 // pred_check
      _
    $region123: #{tpu_custom_call.1} parent=1 // pred_check_branch
      %1673 = sbr.rel (0) target = $region125
    $region124: #{tpu_custom_call.1} parent=1 // pred_region
      %1674 = dma.done [#allocation21], 512
    $region125: #{tpu_custom_call.1} parent=1 // pred_fallthru
      _
    // Predicated region
    $region126: #{tpu_custom_call.1} parent=1 // pred_check
      _
    $region127: #{tpu_custom_call.1} parent=1 // pred_check_branch
      %1676 = sbr.rel (0) target = $region129
    $region128: #{tpu_custom_call.1} parent=1 // pred_region
      %1677 = dma.done [#allocation21], 512
    $region129: #{tpu_custom_call.1} parent=1 // pred_fallthru
      _
    %1678 = vsyncpa [#allocation3], 1
    %1679 = vsyncpa [#allocation6], 1
    %1680 = vsyncpa [#allocation9], 1
    %1681 = vsyncpa [#allocation12], 1
    %1682 = vsyncpa [#allocation15], 1
    %1683 = vsyncpa [#allocation18], 1
    %1684 = vsyncpa [#allocation4], 1
    %1685 = vsyncpa [#allocation21], 1

</llo_original>
